<compile_context>
chip_gen: v7x
topology: tpu7x:2x2x1
jax: 0.10.0
libtpu: 0.0.40
codegen_flags: <defaults>
</compile_context>

<pallas_src>
import functools

import jax
import jax.numpy as jnp
from jax.experimental import pallas as pl
from jax.experimental.pallas import tpu as pltpu

H1, H2 = 400, 300  # hidden sizes from the PyTorch module


def _actor_kernel(x_ref, w1_ref, b1_ref, w2_ref, b2_ref, w3_ref, b3_ref,
                  out_ref, *, max_action):
    # Layer 1: bf16 MXU matmul with f32 accumulation; bias + ReLU in f32 (VPU).
    h = jnp.dot(x_ref[...].astype(jnp.bfloat16), w1_ref[...],
                preferred_element_type=jnp.float32)
    h = jnp.maximum(h + b1_ref[...], 0.0)
    # Layer 2.
    h = jnp.dot(h.astype(jnp.bfloat16), w2_ref[...],
                preferred_element_type=jnp.float32)
    h = jnp.maximum(h + b2_ref[...], 0.0)
    # Layer 3 + tanh scaling (tanh lowers to the EUP -- separate issue slot).
    a = jnp.dot(h.astype(jnp.bfloat16), w3_ref[...],
                preferred_element_type=jnp.float32) + b3_ref[...]
    out_ref[...] = (max_action * jnp.tanh(a)).astype(out_ref.dtype)


def _round_up(x, m):
    return ((x + m - 1) // m) * m


def _pick_batch_tile(batch, block_b):
    """Batch tile: one full block for small B; >= 2 grid steps otherwise."""
    if batch <= 32:
        # Block dim == full array dim is always a legal layout; a single grid
        # step has the least fixed overhead and there is too little work to
        # split across cores anyway.
        return batch
    # Guarantee at least two grid steps so v7x's two TensorCores both get work
    # (dimension_semantics only shards grid steps); cap at block_b rows so
    # per-step VMEM stays modest at training-size batches.
    half = -(-batch // 2)
    return min(block_b, _round_up(half, 8))


def actor_forward(x, params, max_action, *, block_b=1024):
    """Pallas equivalent of Actor.forward(x) = max_action * tanh(MLP(x))."""
    B, S = x.shape
    A = params["w3"].shape[1]

    tb = _pick_batch_tile(B, block_b)
    grid = (pl.cdiv(B, tb),)

    # Advisory cost estimate (helps XLA schedule the weight DMA around the
    # surrounding program; a grid=(1,) call has no internal pipelining).
    flops = 2 * B * (S * H1 + H1 * H2 + H2 * A)
    bytes_accessed = (4 * B * (S + A)                    # f32 activations
                      + 2 * (S * H1 + H1 * H2 + H2 * A)  # bf16 weights
                      + 4 * (H1 + H2 + A))               # f32 biases
    cost = pl.CostEstimate(flops=flops, transcendentals=B * A,
                           bytes_accessed=bytes_accessed)

    kernel = functools.partial(_actor_kernel, max_action=float(max_action))

    compiler_kwargs = dict(dimension_semantics=("parallel",))
    if tb > 1024:
        # Large tiles overflow v5e's 16 MiB default scoped-VMEM limit.
        compiler_kwargs["vmem_limit_bytes"] = 32 * 1024 * 1024

    def _resident(i):  # weights/biases: same block for every batch tile
        return (0, 0)

    def _call(weight_kw):
        in_specs = [
            pl.BlockSpec((tb, S), lambda i: (i, 0)),
            pl.BlockSpec((S, H1), _resident, **weight_kw),
            pl.BlockSpec((1, H1), _resident, **weight_kw),
            pl.BlockSpec((H1, H2), _resident, **weight_kw),
            pl.BlockSpec((1, H2), _resident, **weight_kw),
            pl.BlockSpec((H2, A), _resident, **weight_kw),
            pl.BlockSpec((1, A), _resident, **weight_kw),
        ]
        return pl.pallas_call(
            kernel,
            grid=grid,
            in_specs=in_specs,
            out_specs=pl.BlockSpec((tb, A), lambda i: (i, 0)),
            out_shape=jax.ShapeDtypeStruct((B, A), jnp.float32),
            compiler_params=pltpu.CompilerParams(**compiler_kwargs),
            cost_estimate=cost,
        )(x, params["w1"], params["b1"], params["w2"], params["b2"],
          params["w3"], params["b3"])

    # TODO(synk): for repeated small-batch serving, keep the bf16 weights
    # VMEM-resident across calls (cross-pallas_call prefetch, pattern P10)
    # instead of re-fetching ~515 KB per call.
    try:
        # Constant index_map -> single-buffer the resident weights (drops the
        # useless second VMEM copy that default double-buffering allocates).
        return _call({"pipeline_mode": pl.Buffered(1)})
    except Exception:
        # Fallback for jax versions that reject per-operand buffer counts on
        # the outer pallas_call pipeline; weights are small so default
        # double-buffering is only a minor VMEM waste.
        return _call({})


def init_actor_params(key, state_dim, action_dim):
    """PyTorch-Linear-style init (uniform +/- 1/sqrt(fan_in)).

    Weights stored [in_features, out_features] (transposed vs torch) and cast
    to bf16 so the MXU gets native bf16 operands and the per-call weight DMA
    is halved; biases stay f32, shaped (1, fan_out) for in-kernel broadcast.
    """
    dims = [(state_dim, H1), (H1, H2), (H2, action_dim)]  # l1, l2, l3
    params = {}
    keys = jax.random.split(key, 2 * len(dims))
    for i, (fan_in, fan_out) in enumerate(dims):
        bound = 1.0 / (fan_in ** 0.5)
        params[f"w{i + 1}"] = jax.random.uniform(
            keys[2 * i], (fan_in, fan_out), jnp.float32, -bound, bound
        ).astype(jnp.bfloat16)
        params[f"b{i + 1}"] = jax.random.uniform(
            keys[2 * i + 1], (1, fan_out), jnp.float32, -bound, bound)
    return params


def _reference_forward(x, params, max_action):
    """Plain-JAX f32 reference (bf16 weights upcast) mirroring the module."""
    hp = jax.lax.Precision.HIGHEST
    w1 = params["w1"].astype(jnp.float32)
    w2 = params["w2"].astype(jnp.float32)
    w3 = params["w3"].astype(jnp.float32)
    h = jnp.maximum(jnp.dot(x, w1, precision=hp) + params["b1"], 0.0)
    h = jnp.maximum(jnp.dot(h, w2, precision=hp) + params["b2"], 0.0)
    a = jnp.dot(h, w3, precision=hp) + params["b3"]
    return max_action * jnp.tanh(a)


if __name__ == "__main__":
    state_dim, action_dim, max_action = 16, 8, 2.0

    key = jax.random.PRNGKey(0)
    k_params, k_x1, k_x2 = jax.random.split(key, 3)
    params = init_actor_params(k_params, state_dim, action_dim)

    # Small serving-style batch: single full-batch block, grid=(1,).
    x_small = jax.random.normal(k_x1, (8, state_dim), jnp.float32)
    act_small = jax.block_until_ready(actor_forward(x_small, params, max_action))
    ref_small = _reference_forward(x_small, params, max_action)
    assert act_small.shape == (8, action_dim)
    assert jnp.allclose(act_small, ref_small, atol=1e-1, rtol=5e-2)
    assert bool(jnp.all(jnp.abs(act_small) <= max_action + 1e-4))

    # Larger batch exercises the multi-tile path with a ragged last block
    # (B=40 -> tb=24, grid=(2,), no wrapper-side padding or slicing).
    x_big = jax.random.normal(k_x2, (40, state_dim), jnp.float32)
    act_big = jax.block_until_ready(actor_forward(x_big, params, max_action))
    ref_big = _reference_forward(x_big, params, max_action)
    assert act_big.shape == (40, action_dim)
    assert jnp.allclose(act_big, ref_big, atol=1e-1, rtol=5e-2)

    print("KERNEL_OK")
</pallas_src>

<mosaic_0001>
module attributes {stable_mosaic.version = 11 : i64} {
  func.func @_actor_kernel(%arg0: i32, %arg1: memref<8x16xf32, #tpu.memory_space<vmem>>, %arg2: memref<16x400xbf16, #tpu.memory_space<vmem>>, %arg3: memref<1x400xf32, #tpu.memory_space<vmem>>, %arg4: memref<400x300xbf16, #tpu.memory_space<vmem>>, %arg5: memref<1x300xf32, #tpu.memory_space<vmem>>, %arg6: memref<300x8xbf16, #tpu.memory_space<vmem>>, %arg7: memref<1x8xf32, #tpu.memory_space<vmem>>, %arg8: memref<8x8xf32, #tpu.memory_space<vmem>>) attributes {dimension_semantics = [#tpu.dimension_semantics<parallel>], iteration_bounds = array<i64: 1>, scalar_prefetch = 0 : i64, scratch_operands = 0 : i64, tpu.core_type = #tpu.core_type<tc>, window_params = [{transform_indices = @transform_0, window_bounds = array<i64: 8, 16>}, {pipeline_mode = #tpu.pipeline_mode<synchronous>, transform_indices = @transform_1, window_bounds = array<i64: 16, 400>}, {pipeline_mode = #tpu.pipeline_mode<synchronous>, transform_indices = @transform_2, window_bounds = array<i64: 1, 400>}, {pipeline_mode = #tpu.pipeline_mode<synchronous>, transform_indices = @transform_3, window_bounds = array<i64: 400, 300>}, {pipeline_mode = #tpu.pipeline_mode<synchronous>, transform_indices = @transform_4, window_bounds = array<i64: 1, 300>}, {pipeline_mode = #tpu.pipeline_mode<synchronous>, transform_indices = @transform_5, window_bounds = array<i64: 300, 8>}, {pipeline_mode = #tpu.pipeline_mode<synchronous>, transform_indices = @transform_6, window_bounds = array<i64: 1, 8>}, {transform_indices = @transform_7, window_bounds = array<i64: 8, 8>}]} {
    %c0 = arith.constant 0 : index
    %c0_0 = arith.constant 0 : index
    %0 = vector.load %arg1[%c0, %c0_0] : memref<8x16xf32, #tpu.memory_space<vmem>>, vector<8x16xf32>
    %1 = arith.truncf %0 : vector<8x16xf32> to vector<8x16xbf16>
    %c0_1 = arith.constant 0 : index
    %c0_2 = arith.constant 0 : index
    %2 = vector.load %arg2[%c0_1, %c0_2] : memref<16x400xbf16, #tpu.memory_space<vmem>>, vector<16x400xbf16>
    %cst = arith.constant dense<0.000000e+00> : vector<8x400xf32>
    %3 = tpu.matmul %1, %2, %cst {dimension_numbers = #tpu.dot_dimension_numbers<[1], [0], [0], [1], [0, 0, 1, 1], [], []>} : vector<8x16xbf16>, vector<16x400xbf16>, vector<8x400xf32> -> vector<8x400xf32>
    %c0_3 = arith.constant 0 : index
    %c0_4 = arith.constant 0 : index
    %4 = vector.load %arg3[%c0_3, %c0_4] : memref<1x400xf32, #tpu.memory_space<vmem>>, vector<1x400xf32>
    %5 = vector.broadcast %4 : vector<1x400xf32> to vector<8x400xf32>
    %6 = arith.addf %3, %5 : vector<8x400xf32>
    %cst_5 = arith.constant 0.000000e+00 : f32
    %7 = vector.broadcast %cst_5 : f32 to vector<8x400xf32>
    %8 = arith.maximumf %6, %7 : vector<8x400xf32>
    %9 = arith.truncf %8 : vector<8x400xf32> to vector<8x400xbf16>
    %c0_6 = arith.constant 0 : index
    %c0_7 = arith.constant 0 : index
    %10 = vector.load %arg4[%c0_6, %c0_7] : memref<400x300xbf16, #tpu.memory_space<vmem>>, vector<400x300xbf16>
    %cst_8 = arith.constant dense<0.000000e+00> : vector<8x300xf32>
    %11 = tpu.matmul %9, %10, %cst_8 {dimension_numbers = #tpu.dot_dimension_numbers<[1], [0], [0], [1], [0, 0, 1, 1], [], []>} : vector<8x400xbf16>, vector<400x300xbf16>, vector<8x300xf32> -> vector<8x300xf32>
    %c0_9 = arith.constant 0 : index
    %c0_10 = arith.constant 0 : index
    %12 = vector.load %arg5[%c0_9, %c0_10] : memref<1x300xf32, #tpu.memory_space<vmem>>, vector<1x300xf32>
    %13 = vector.broadcast %12 : vector<1x300xf32> to vector<8x300xf32>
    %14 = arith.addf %11, %13 : vector<8x300xf32>
    %cst_11 = arith.constant 0.000000e+00 : f32
    %15 = vector.broadcast %cst_11 : f32 to vector<8x300xf32>
    %16 = arith.maximumf %14, %15 : vector<8x300xf32>
    %17 = arith.truncf %16 : vector<8x300xf32> to vector<8x300xbf16>
    %c0_12 = arith.constant 0 : index
    %c0_13 = arith.constant 0 : index
    %18 = vector.load %arg6[%c0_12, %c0_13] : memref<300x8xbf16, #tpu.memory_space<vmem>>, vector<300x8xbf16>
    %cst_14 = arith.constant dense<0.000000e+00> : vector<8x8xf32>
    %19 = tpu.matmul %17, %18, %cst_14 {dimension_numbers = #tpu.dot_dimension_numbers<[1], [0], [0], [1], [0, 0, 1, 1], [], []>} : vector<8x300xbf16>, vector<300x8xbf16>, vector<8x8xf32> -> vector<8x8xf32>
    %c0_15 = arith.constant 0 : index
    %c0_16 = arith.constant 0 : index
    %20 = vector.load %arg7[%c0_15, %c0_16] : memref<1x8xf32, #tpu.memory_space<vmem>>, vector<1x8xf32>
    %21 = vector.broadcast %20 : vector<1x8xf32> to vector<8x8xf32>
    %22 = arith.addf %19, %21 : vector<8x8xf32>
    %23 = math.tanh %22 : vector<8x8xf32>
    %cst_17 = arith.constant 2.000000e+00 : f32
    %24 = vector.broadcast %cst_17 : f32 to vector<8x8xf32>
    %25 = arith.mulf %24, %23 : vector<8x8xf32>
    %c0_18 = arith.constant 0 : index
    %c0_19 = arith.constant 0 : index
    %26 = vector.load %arg8[%c0_18, %c0_19] : memref<8x8xf32, #tpu.memory_space<vmem>>, vector<8x8xf32>
    tpu.vector_store %arg8[%c0_18, %c0_19], %25 {strides = array<i32>} : memref<8x8xf32, #tpu.memory_space<vmem>>, vector<8x8xf32>,
    return
  }
  func.func @transform_0(%arg0: i32) -> (i32, i32) {
    %c0_i32 = arith.constant 0 : i32
    %c0_i32_0 = arith.constant 0 : i32
    return %arg0, %c0_i32 : i32, i32
  }
  func.func @transform_1(%arg0: i32) -> (i32, i32) {
    %c0_i32 = arith.constant 0 : i32
    %c0_i32_0 = arith.constant 0 : i32
    %c0_i32_1 = arith.constant 0 : i32
    return %c0_i32, %c0_i32_0 : i32, i32
  }
  func.func @transform_2(%arg0: i32) -> (i32, i32) {
    %c0_i32 = arith.constant 0 : i32
    %c0_i32_0 = arith.constant 0 : i32
    %c0_i32_1 = arith.constant 0 : i32
    return %c0_i32, %c0_i32_0 : i32, i32
  }
  func.func @transform_3(%arg0: i32) -> (i32, i32) {
    %c0_i32 = arith.constant 0 : i32
    %c0_i32_0 = arith.constant 0 : i32
    %c0_i32_1 = arith.constant 0 : i32
    return %c0_i32, %c0_i32_0 : i32, i32
  }
  func.func @transform_4(%arg0: i32) -> (i32, i32) {
    %c0_i32 = arith.constant 0 : i32
    %c0_i32_0 = arith.constant 0 : i32
    %c0_i32_1 = arith.constant 0 : i32
    return %c0_i32, %c0_i32_0 : i32, i32
  }
  func.func @transform_5(%arg0: i32) -> (i32, i32) {
    %c0_i32 = arith.constant 0 : i32
    %c0_i32_0 = arith.constant 0 : i32
    %c0_i32_1 = arith.constant 0 : i32
    return %c0_i32, %c0_i32_0 : i32, i32
  }
  func.func @transform_6(%arg0: i32) -> (i32, i32) {
    %c0_i32 = arith.constant 0 : i32
    %c0_i32_0 = arith.constant 0 : i32
    %c0_i32_1 = arith.constant 0 : i32
    return %c0_i32, %c0_i32_0 : i32, i32
  }
  func.func @transform_7(%arg0: i32) -> (i32, i32) {
    %c0_i32 = arith.constant 0 : i32
    %c0_i32_0 = arith.constant 0 : i32
    return %arg0, %c0_i32 : i32, i32
  }
}

module attributes {stable_mosaic.version = 11 : i64} {
  func.func @_actor_kernel(%arg0: i32, %arg1: memref<8x16xf32, #tpu.memory_space<vmem>>, %arg2: memref<16x400xbf16, #tpu.memory_space<vmem>>, %arg3: memref<1x400xf32, #tpu.memory_space<vmem>>, %arg4: memref<400x300xbf16, #tpu.memory_space<vmem>>, %arg5: memref<1x300xf32, #tpu.memory_space<vmem>>, %arg6: memref<300x8xbf16, #tpu.memory_space<vmem>>, %arg7: memref<1x8xf32, #tpu.memory_space<vmem>>, %arg8: memref<8x8xf32, #tpu.memory_space<vmem>>) attributes {dimension_semantics = [#tpu.dimension_semantics<parallel>], iteration_bounds = array<i64: 1>, scalar_prefetch = 0 : i64, scratch_operands = 0 : i64, tpu.core_type = #tpu.core_type<tc>, window_params = [{transform_indices = @transform_0, window_bounds = array<i64: 8, 16>}, {pipeline_mode = #tpu.pipeline_mode<synchronous>, transform_indices = @transform_1, window_bounds = array<i64: 16, 400>}, {pipeline_mode = #tpu.pipeline_mode<synchronous>, transform_indices = @transform_2, window_bounds = array<i64: 1, 400>}, {pipeline_mode = #tpu.pipeline_mode<synchronous>, transform_indices = @transform_3, window_bounds = array<i64: 400, 300>}, {pipeline_mode = #tpu.pipeline_mode<synchronous>, transform_indices = @transform_4, window_bounds = array<i64: 1, 300>}, {pipeline_mode = #tpu.pipeline_mode<synchronous>, transform_indices = @transform_5, window_bounds = array<i64: 300, 8>}, {pipeline_mode = #tpu.pipeline_mode<synchronous>, transform_indices = @transform_6, window_bounds = array<i64: 1, 8>}, {transform_indices = @transform_7, window_bounds = array<i64: 8, 8>}]} {
    %c0 = arith.constant 0 : index
    %c0_0 = arith.constant 0 : index
    %0 = vector.load %arg1[%c0, %c0_0] : memref<8x16xf32, #tpu.memory_space<vmem>>, vector<8x16xf32>
    %1 = arith.truncf %0 : vector<8x16xf32> to vector<8x16xbf16>
    %c0_1 = arith.constant 0 : index
    %c0_2 = arith.constant 0 : index
    %2 = vector.load %arg2[%c0_1, %c0_2] : memref<16x400xbf16, #tpu.memory_space<vmem>>, vector<16x400xbf16>
    %cst = arith.constant dense<0.000000e+00> : vector<8x400xf32>
    %3 = tpu.matmul %1, %2, %cst {dimension_numbers = #tpu.dot_dimension_numbers<[1], [0], [0], [1], [0, 0, 1, 1], [], []>} : vector<8x16xbf16>, vector<16x400xbf16>, vector<8x400xf32> -> vector<8x400xf32>
    %c0_3 = arith.constant 0 : index
    %c0_4 = arith.constant 0 : index
    %4 = vector.load %arg3[%c0_3, %c0_4] : memref<1x400xf32, #tpu.memory_space<vmem>>, vector<1x400xf32>
    %5 = vector.broadcast %4 : vector<1x400xf32> to vector<8x400xf32>
    %6 = arith.addf %3, %5 : vector<8x400xf32>
    %cst_5 = arith.constant 0.000000e+00 : f32
    %7 = vector.broadcast %cst_5 : f32 to vector<8x400xf32>
    %8 = arith.maximumf %6, %7 : vector<8x400xf32>
    %9 = arith.truncf %8 : vector<8x400xf32> to vector<8x400xbf16>
    %c0_6 = arith.constant 0 : index
    %c0_7 = arith.constant 0 : index
    %10 = vector.load %arg4[%c0_6, %c0_7] : memref<400x300xbf16, #tpu.memory_space<vmem>>, vector<400x300xbf16>
    %cst_8 = arith.constant dense<0.000000e+00> : vector<8x300xf32>
    %11 = tpu.matmul %9, %10, %cst_8 {dimension_numbers = #tpu.dot_dimension_numbers<[1], [0], [0], [1], [0, 0, 1, 1], [], []>} : vector<8x400xbf16>, vector<400x300xbf16>, vector<8x300xf32> -> vector<8x300xf32>
    %c0_9 = arith.constant 0 : index
    %c0_10 = arith.constant 0 : index
    %12 = vector.load %arg5[%c0_9, %c0_10] : memref<1x300xf32, #tpu.memory_space<vmem>>, vector<1x300xf32>
    %13 = vector.broadcast %12 : vector<1x300xf32> to vector<8x300xf32>
    %14 = arith.addf %11, %13 : vector<8x300xf32>
    %cst_11 = arith.constant 0.000000e+00 : f32
    %15 = vector.broadcast %cst_11 : f32 to vector<8x300xf32>
    %16 = arith.maximumf %14, %15 : vector<8x300xf32>
    %17 = arith.truncf %16 : vector<8x300xf32> to vector<8x300xbf16>
    %c0_12 = arith.constant 0 : index
    %c0_13 = arith.constant 0 : index
    %18 = vector.load %arg6[%c0_12, %c0_13] : memref<300x8xbf16, #tpu.memory_space<vmem>>, vector<300x8xbf16>
    %cst_14 = arith.constant dense<0.000000e+00> : vector<8x8xf32>
    %19 = tpu.matmul %17, %18, %cst_14 {dimension_numbers = #tpu.dot_dimension_numbers<[1], [0], [0], [1], [0, 0, 1, 1], [], []>} : vector<8x300xbf16>, vector<300x8xbf16>, vector<8x8xf32> -> vector<8x8xf32>
    %c0_15 = arith.constant 0 : index
    %c0_16 = arith.constant 0 : index
    %20 = vector.load %arg7[%c0_15, %c0_16] : memref<1x8xf32, #tpu.memory_space<vmem>>, vector<1x8xf32>
    %21 = vector.broadcast %20 : vector<1x8xf32> to vector<8x8xf32>
    %22 = arith.addf %19, %21 : vector<8x8xf32>
    %23 = math.tanh %22 : vector<8x8xf32>
    %cst_17 = arith.constant 2.000000e+00 : f32
    %24 = vector.broadcast %cst_17 : f32 to vector<8x8xf32>
    %25 = arith.mulf %24, %23 : vector<8x8xf32>
    %c0_18 = arith.constant 0 : index
    %c0_19 = arith.constant 0 : index
    %26 = vector.load %arg8[%c0_18, %c0_19] : memref<8x8xf32, #tpu.memory_space<vmem>>, vector<8x8xf32>
    tpu.vector_store %arg8[%c0_18, %c0_19], %25 {strides = array<i32>} : memref<8x8xf32, #tpu.memory_space<vmem>>, vector<8x8xf32>,
    return
  }
  func.func @transform_0(%arg0: i32) -> (i32, i32) {
    %c0_i32 = arith.constant 0 : i32
    %c0_i32_0 = arith.constant 0 : i32
    return %arg0, %c0_i32 : i32, i32
  }
  func.func @transform_1(%arg0: i32) -> (i32, i32) {
    %c0_i32 = arith.constant 0 : i32
    %c0_i32_0 = arith.constant 0 : i32
    %c0_i32_1 = arith.constant 0 : i32
    return %c0_i32, %c0_i32_0 : i32, i32
  }
  func.func @transform_2(%arg0: i32) -> (i32, i32) {
    %c0_i32 = arith.constant 0 : i32
    %c0_i32_0 = arith.constant 0 : i32
    %c0_i32_1 = arith.constant 0 : i32
    return %c0_i32, %c0_i32_0 : i32, i32
  }
  func.func @transform_3(%arg0: i32) -> (i32, i32) {
    %c0_i32 = arith.constant 0 : i32
    %c0_i32_0 = arith.constant 0 : i32
    %c0_i32_1 = arith.constant 0 : i32
    return %c0_i32, %c0_i32_0 : i32, i32
  }
  func.func @transform_4(%arg0: i32) -> (i32, i32) {
    %c0_i32 = arith.constant 0 : i32
    %c0_i32_0 = arith.constant 0 : i32
    %c0_i32_1 = arith.constant 0 : i32
    return %c0_i32, %c0_i32_0 : i32, i32
  }
  func.func @transform_5(%arg0: i32) -> (i32, i32) {
    %c0_i32 = arith.constant 0 : i32
    %c0_i32_0 = arith.constant 0 : i32
    %c0_i32_1 = arith.constant 0 : i32
    return %c0_i32, %c0_i32_0 : i32, i32
  }
  func.func @transform_6(%arg0: i32) -> (i32, i32) {
    %c0_i32 = arith.constant 0 : i32
    %c0_i32_0 = arith.constant 0 : i32
    %c0_i32_1 = arith.constant 0 : i32
    return %c0_i32, %c0_i32_0 : i32, i32
  }
  func.func @transform_7(%arg0: i32) -> (i32, i32) {
    %c0_i32 = arith.constant 0 : i32
    %c0_i32_0 = arith.constant 0 : i32
    return %arg0, %c0_i32 : i32, i32
  }
}

</mosaic_0001>

<llo_original>
// kernel: tpu_custom_call.1
$region0: #{tpu_custom_call.1}
  #allocation0 [shape = 'u32[]', space=smem, size = 0x4, offset = 0x4, fixed_abs, tag = 'smem constant byte address 0x4 - core index']
  #allocation1 [shape = 'u32[144,128]{1,0:T(1,128)}', space=vmem, size = 0x12000, scoped, tag = 'internal scratch']
  %s0 = inlined_call_operand.vmem [shape: f32[8,16], index: 0, kind: input, shape index: {}]
  %s1 = inlined_call_operand.vmem [shape: bf16[16,400], index: 1, kind: input, shape index: {}]
  %s2 = inlined_call_operand.vmem [shape: f32[1,400], index: 2, kind: input, shape index: {}]
  %s3 = inlined_call_operand.hbm [shape: bf16[400,300], index: 3, kind: input, shape index: {}]
  %s4 = inlined_call_operand.vmem [shape: f32[1,300], index: 4, kind: input, shape index: {}]
  %s5 = inlined_call_operand.vmem [shape: bf16[300,8], index: 5, kind: input, shape index: {}]
  %s6 = inlined_call_operand.vmem [shape: f32[1,8], index: 6, kind: input, shape index: {}]
  %s7 = inlined_call_operand.hbm [shape: f32[8,8], index: 7, kind: output, shape index: {}]
  %s8 = sld [smem:[#allocation0]]
  $region42: #{tpu_custom_call.1} parent=0
    _
  %s10 = ssub.s32 1, %s8
  %s11 = scalar_select 0, %s10, %s8
  $region1: #{tpu_custom_call.1} parent=0
    #allocation2 [shape = 'u8[307200]{0}', space=vmem, size = 0x4b000, scoped, tag = 'input window, operand 3, single buffered']
    #allocation3 [shape = 's32[1]{0}', space=sflag, size = 0x4, scoped, tag = 'scoped memory for tpu_custom_call.1']
    #allocation4 [shape = 's32[1]{0}', space=sflag, size = 0x4, scoped, tag = 'scoped memory for tpu_custom_call.1']
    #allocation5 [shape = 'u8[4096]{0}', space=vmem, size = 0x1000, scoped, tag = 'output window, operand 0, single buffered']
    %12 = vsyncpa [#allocation3], 0
    %13 = vsyncpa [#allocation4], 0
    // Predicated region
    $region2: #{tpu_custom_call.1} parent=1 // pred_check
      _
    $region3: #{tpu_custom_call.1} parent=1 // pred_check_branch
      %15 = sbr.rel (0) target = $region5
    $region4: #{tpu_custom_call.1} parent=1 // pred_region
      _
    $region5: #{tpu_custom_call.1} parent=1 // pred_fallthru
      _
    // Predicated region
    $region6: #{tpu_custom_call.1} parent=1 // pred_check
      _
    $region7: #{tpu_custom_call.1} parent=1 // pred_check_branch
      %17 = sbr.rel (0) target = $region9
    $region8: #{tpu_custom_call.1} parent=1 // pred_region
      _
    $region9: #{tpu_custom_call.1} parent=1 // pred_fallthru
      _
    // Predicated region
    $region10: #{tpu_custom_call.1} parent=1 // pred_check
      _
    $region11: #{tpu_custom_call.1} parent=1 // pred_check_branch
      %19 = sbr.rel (0) target = $region13
    $region12: #{tpu_custom_call.1} parent=1 // pred_region
      _
    $region13: #{tpu_custom_call.1} parent=1 // pred_fallthru
      _
    // Predicated region
    $region14: #{tpu_custom_call.1} parent=1 // pred_check
      _
    $region15: #{tpu_custom_call.1} parent=1 // pred_check_branch
      %21 = sbr.rel (0) target = $region17
    $region16: #{tpu_custom_call.1} parent=1 // pred_region
      %s23 = ssub.s32 9600, 9600
      %24 = vsyncadd [#allocation3], %s23
      %s25 = sshll.u32 [#allocation2], 4
      %s26 = int_to_ptr.vmem [resolvable:$true] %s25
      %31 = dma.hbm_to_vmem [thread:$0]  %s3, 9600, %s26, [#allocation3], 192, 192, 12
    $region17: #{tpu_custom_call.1} parent=1 // pred_fallthru
      _
    // Predicated region
    $region18: #{tpu_custom_call.1} parent=1 // pred_check
      _
    $region19: #{tpu_custom_call.1} parent=1 // pred_check_branch
      %33 = sbr.rel (0) target = $region21
    $region20: #{tpu_custom_call.1} parent=1 // pred_region
      _
    $region21: #{tpu_custom_call.1} parent=1 // pred_fallthru
      _
    // Predicated region
    $region22: #{tpu_custom_call.1} parent=1 // pred_check
      _
    $region23: #{tpu_custom_call.1} parent=1 // pred_check_branch
      %35 = sbr.rel (0) target = $region25
    $region24: #{tpu_custom_call.1} parent=1 // pred_region
      _
    $region25: #{tpu_custom_call.1} parent=1 // pred_fallthru
      _
    // Predicated region
    $region26: #{tpu_custom_call.1} parent=1 // pred_check
      _
    $region27: #{tpu_custom_call.1} parent=1 // pred_check_branch
      %37 = sbr.rel (0) target = $region29
    $region28: #{tpu_custom_call.1} parent=1 // pred_region
      _
    $region29: #{tpu_custom_call.1} parent=1 // pred_fallthru
      _
    // Predicated region
    $region30: #{tpu_custom_call.1} parent=1 // pred_check
      _
    $region31: #{tpu_custom_call.1} parent=1 // pred_check_branch
      %39 = sbr.rel (0) target = $region33
    $region32: #{tpu_custom_call.1} parent=1 // pred_region
      %40 = dma.done [#allocation3], 9600
    $region33: #{tpu_custom_call.1} parent=1 // pred_fallthru
      _
    %v42 = vld [vmem:[%s0] sm:$0xff]
    %v43 = vpack.c.bf16 %v42, %v42
    %v44 = vld [vmem:[%s1] sm:$0xff]
    %v45 = vld [vmem:[%s1 + $0x8] sm:$0xff]
    %v46 = vld [vmem:[%s1 + $0x10] sm:$0xff]
    %v47 = vld [vmem:[%s1 + $0x18] sm:$0xff]
    %v48 = vld [vmem:[%s2] sm:$0xf]
    %v50 = vlaneseq
    %v51 = vshrl.u32 %v50, 7
    %v52 = vsub.s32 0, %v51
    %v53 = vrot.slane %v48, %v52
    %v54 = vlaneseq
    %v55 = vshrl.u32 %v54, 7
    %v56 = vsub.s32 1, %v55
    %v57 = vrot.slane %v48, %v56
    %v58 = vlaneseq
    %v59 = vshrl.u32 %v58, 7
    %v60 = vsub.s32 2, %v59
    %v61 = vrot.slane %v48, %v60
    %v62 = vlaneseq
    %v63 = vshrl.u32 %v62, 7
    %v64 = vsub.s32 3, %v63
    %v65 = vrot.slane %v48, %v64
    %v74 = vunpack.c.l.b16 %v44
    %v75 = vunpack.c.h.b16 %v44
    %v76 = vunpack.c.l.b16 %v45
    %v77 = vunpack.c.h.b16 %v45
    %v78 = vunpack.c.l.b16 %v46
    %v79 = vunpack.c.h.b16 %v46
    %v80 = vunpack.c.l.b16 %v47
    %v81 = vunpack.c.h.b16 %v47
    %v82 = vpack.c.b16 %v78, %v74
    %v83 = vpack.c.b16 %v79, %v75
    %v84 = vpack.c.b16 %v80, %v76
    %v85 = vpack.c.b16 %v81, %v77
    %vm90 = vcmask 130048
    %v92 = vsel %vm90, %v43, 0
    %94 = vmatprep.subr.bf16.mxu0 %v83
    %95 = vmatpush1.bf16.msra.mxu0 %v82
    %96 = vmatprep.subr.bf16.mxu0 0
    %97 = vmatpush1.bf16.msra.mxu0 0
    %98 = vmatprep.subr.bf16.mxu0 0
    %99 = vmatpush1.bf16.msra.mxu0 0
    %100 = vmatprep.subr.bf16.mxu0 0
    %101 = vmatpush1.bf16.msra.mxu0 0
    %102 = vmatprep.subr.bf16.mxu0 0
    %103 = vmatpush1.bf16.msra.mxu0 0
    %104 = vmatprep.subr.bf16.mxu0 0
    %105 = vmatpush1.bf16.msra.mxu0 0
    %106 = vmatprep.subr.bf16.mxu0 0
    %107 = vmatpush1.bf16.msra.mxu0 0
    %108 = vmatprep.subr.bf16.mxu0 0
    %109 = vmatpush1.bf16.msra.mxu0 0
    %110 = vmatprep.subr.bf16.mxu0 0
    %111 = vmatpush1.bf16.msra.mxu0 0
    %112 = vmatprep.subr.bf16.mxu0 0
    %113 = vmatpush1.bf16.msra.mxu0 0
    %114 = vmatprep.subr.bf16.mxu0 0
    %115 = vmatpush1.bf16.msra.mxu0 0
    %116 = vmatprep.subr.bf16.mxu0 0
    %117 = vmatpush1.bf16.msra.mxu0 0
    %118 = vmatprep.subr.bf16.mxu0 0
    %119 = vmatpush1.bf16.msra.mxu0 0
    %120 = vmatprep.subr.bf16.mxu0 0
    %121 = vmatpush1.bf16.msra.mxu0 0
    %122 = vmatprep.subr.bf16.mxu0 0
    %123 = vmatpush1.bf16.msra.mxu0 0
    %124 = vmatprep.subr.bf16.mxu0 0
    %125 = vmatpush1.bf16.msra.mxu0 0
    %126 = vmatprep.mubr.bf16.mxu0 0
    %127 = vmatmul.mubr.bf16.gmra.mrb[0].mxu0 %v92
    %v128 = vpop.f32.mrb[0].mxu0
    %v129 = vadd.f32 %v53, %v128
    %v130 = vpop.f32.mrb[0].mxu0
    %v131 = vadd.f32 %v57, %v130
    %v132 = vpop.f32.mrb[0].mxu0
    %v133 = vpop.f32.mrb[0].mxu0
    %134 = vdwg.mxu0
    %135 = vmatprep.subr.bf16.mxu0 %v85
    %136 = vmatpush1.bf16.msra.mxu0 %v84
    %137 = vmatprep.subr.bf16.mxu0 0
    %138 = vmatpush1.bf16.msra.mxu0 0
    %139 = vmatprep.subr.bf16.mxu0 0
    %140 = vmatpush1.bf16.msra.mxu0 0
    %141 = vmatprep.subr.bf16.mxu0 0
    %142 = vmatpush1.bf16.msra.mxu0 0
    %143 = vmatprep.subr.bf16.mxu0 0
    %144 = vmatpush1.bf16.msra.mxu0 0
    %145 = vmatprep.subr.bf16.mxu0 0
    %146 = vmatpush1.bf16.msra.mxu0 0
    %147 = vmatprep.subr.bf16.mxu0 0
    %148 = vmatpush1.bf16.msra.mxu0 0
    %149 = vmatprep.subr.bf16.mxu0 0
    %150 = vmatpush1.bf16.msra.mxu0 0
    %151 = vmatprep.subr.bf16.mxu0 0
    %152 = vmatpush1.bf16.msra.mxu0 0
    %153 = vmatprep.subr.bf16.mxu0 0
    %154 = vmatpush1.bf16.msra.mxu0 0
    %155 = vmatprep.subr.bf16.mxu0 0
    %156 = vmatpush1.bf16.msra.mxu0 0
    %157 = vmatprep.subr.bf16.mxu0 0
    %158 = vmatpush1.bf16.msra.mxu0 0
    %159 = vmatprep.subr.bf16.mxu0 0
    %160 = vmatpush1.bf16.msra.mxu0 0
    %161 = vmatprep.subr.bf16.mxu0 0
    %162 = vmatpush1.bf16.msra.mxu0 0
    %163 = vmatprep.subr.bf16.mxu0 0
    %164 = vmatpush1.bf16.msra.mxu0 0
    %165 = vmatprep.subr.bf16.mxu0 0
    %166 = vmatpush1.bf16.msra.mxu0 0
    %167 = vmatprep.mubr.bf16.mxu0 0
    %168 = vmatmul.mubr.bf16.gmra.mrb[0].mxu0 %v92
    %v169 = vpop.f32.mrb[0].mxu0
    %v170 = vadd.f32 %v61, %v169
    %v171 = vpop.f32.mrb[0].mxu0
    %v172 = vadd.f32 %v65, %v171
    %v173 = vpop.f32.mrb[0].mxu0
    %v174 = vpop.f32.mrb[0].mxu0
    %175 = vdwg.mxu0
    %v176 = vmax.f32 %v129, 0.0
    %v177 = vmax.f32 %v131, 0.0
    %v178 = vmax.f32 %v170, 0.0
    %v179 = vmax.f32 %v172, 0.0
    %v180 = vpack.c.bf16 %v176, %v176
    %v181 = vpack.c.bf16 %v177, %v177
    %v182 = vpack.c.bf16 %v178, %v178
    %v183 = vpack.c.bf16 %v179, %v179
    %v184 = vld [vmem:[#allocation2] sm:$0xff]
    %v185 = vld [vmem:[#allocation2 + $0x8] sm:$0xf]
    %v186 = vld [vmem:[#allocation2 + $0xc] sm:$0xff]
    %v187 = vld [vmem:[#allocation2 + $0x14] sm:$0xf]
    %v188 = vld [vmem:[#allocation2 + $0x18] sm:$0xff]
    %v189 = vld [vmem:[#allocation2 + $0x20] sm:$0xf]
    %v190 = vld [vmem:[#allocation2 + $0x24] sm:$0xff]
    %v191 = vld [vmem:[#allocation2 + $0x2c] sm:$0xf]
    %v192 = vld [vmem:[#allocation2 + $0x30] sm:$0xff]
    %v193 = vld [vmem:[#allocation2 + $0x38] sm:$0xf]
    %v194 = vld [vmem:[#allocation2 + $0x3c] sm:$0xff]
    %v195 = vld [vmem:[#allocation2 + $0x44] sm:$0xf]
    %v196 = vld [vmem:[#allocation2 + $0x48] sm:$0xff]
    %v197 = vld [vmem:[#allocation2 + $0x50] sm:$0xf]
    %v198 = vld [vmem:[#allocation2 + $0x54] sm:$0xff]
    %v199 = vld [vmem:[#allocation2 + $0x5c] sm:$0xf]
    %v200 = vld [vmem:[#allocation2 + $0x60] sm:$0xff]
    %v201 = vld [vmem:[#allocation2 + $0x68] sm:$0xf]
    %v202 = vld [vmem:[#allocation2 + $0x6c] sm:$0xff]
    %v203 = vld [vmem:[#allocation2 + $0x74] sm:$0xf]
    %v204 = vld [vmem:[#allocation2 + $0x78] sm:$0xff]
    %v205 = vld [vmem:[#allocation2 + $0x80] sm:$0xf]
    %v206 = vld [vmem:[#allocation2 + $0x84] sm:$0xff]
    %v207 = vld [vmem:[#allocation2 + $0x8c] sm:$0xf]
    %v208 = vld [vmem:[#allocation2 + $0x90] sm:$0xff]
    %v209 = vld [vmem:[#allocation2 + $0x98] sm:$0xf]
    %v210 = vld [vmem:[#allocation2 + $0x9c] sm:$0xff]
    %v211 = vld [vmem:[#allocation2 + $0xa4] sm:$0xf]
    %v212 = vld [vmem:[#allocation2 + $0xa8] sm:$0xff]
    %v213 = vld [vmem:[#allocation2 + $0xb0] sm:$0xf]
    %v214 = vld [vmem:[#allocation2 + $0xb4] sm:$0xff]
    %v215 = vld [vmem:[#allocation2 + $0xbc] sm:$0xf]
    %v216 = vld [vmem:[#allocation2 + $0xc0] sm:$0xff]
    %v217 = vld [vmem:[#allocation2 + $0xc8] sm:$0xf]
    %v218 = vld [vmem:[#allocation2 + $0xcc] sm:$0xff]
    %v219 = vld [vmem:[#allocation2 + $0xd4] sm:$0xf]
    %v220 = vld [vmem:[#allocation2 + $0xd8] sm:$0xff]
    %v221 = vld [vmem:[#allocation2 + $0xe0] sm:$0xf]
    %v222 = vld [vmem:[#allocation2 + $0xe4] sm:$0xff]
    %v223 = vld [vmem:[#allocation2 + $0xec] sm:$0xf]
    %v224 = vld [vmem:[#allocation2 + $0xf0] sm:$0xff]
    %v225 = vld [vmem:[#allocation2 + $0xf8] sm:$0xf]
    %v226 = vld [vmem:[#allocation2 + $0xfc] sm:$0xff]
    %v227 = vld [vmem:[#allocation2 + $0x104] sm:$0xf]
    %v228 = vld [vmem:[#allocation2 + $0x108] sm:$0xff]
    %v229 = vld [vmem:[#allocation2 + $0x110] sm:$0xf]
    %v230 = vld [vmem:[#allocation2 + $0x114] sm:$0xff]
    %v231 = vld [vmem:[#allocation2 + $0x11c] sm:$0xf]
    %v232 = vld [vmem:[#allocation2 + $0x120] sm:$0xff]
    %v233 = vld [vmem:[#allocation2 + $0x128] sm:$0xf]
    %v234 = vld [vmem:[#allocation2 + $0x12c] sm:$0xff]
    %v235 = vld [vmem:[#allocation2 + $0x134] sm:$0xf]
    %v236 = vld [vmem:[#allocation2 + $0x138] sm:$0xff]
    %v237 = vld [vmem:[#allocation2 + $0x140] sm:$0xf]
    %v238 = vld [vmem:[#allocation2 + $0x144] sm:$0xff]
    %v239 = vld [vmem:[#allocation2 + $0x14c] sm:$0xf]
    %v240 = vld [vmem:[#allocation2 + $0x150] sm:$0xff]
    %v241 = vld [vmem:[#allocation2 + $0x158] sm:$0xf]
    %v242 = vld [vmem:[#allocation2 + $0x15c] sm:$0xff]
    %v243 = vld [vmem:[#allocation2 + $0x164] sm:$0xf]
    %v244 = vld [vmem:[#allocation2 + $0x168] sm:$0xff]
    %v245 = vld [vmem:[#allocation2 + $0x170] sm:$0xf]
    %v246 = vld [vmem:[#allocation2 + $0x174] sm:$0xff]
    %v247 = vld [vmem:[#allocation2 + $0x17c] sm:$0xf]
    %v248 = vld [vmem:[#allocation2 + $0x180] sm:$0xff]
    %v249 = vld [vmem:[#allocation2 + $0x188] sm:$0xf]
    %v250 = vld [vmem:[#allocation2 + $0x18c] sm:$0xff]
    %v251 = vld [vmem:[#allocation2 + $0x194] sm:$0xf]
    %v252 = vld [vmem:[#allocation2 + $0x198] sm:$0xff]
    %v253 = vld [vmem:[#allocation2 + $0x1a0] sm:$0xf]
    %v254 = vld [vmem:[#allocation2 + $0x1a4] sm:$0xff]
    %v255 = vld [vmem:[#allocation2 + $0x1ac] sm:$0xf]
    %v256 = vld [vmem:[#allocation2 + $0x1b0] sm:$0xff]
    %v257 = vld [vmem:[#allocation2 + $0x1b8] sm:$0xf]
    %v258 = vld [vmem:[#allocation2 + $0x1bc] sm:$0xff]
    %v259 = vld [vmem:[#allocation2 + $0x1c4] sm:$0xf]
    %v260 = vld [vmem:[#allocation2 + $0x1c8] sm:$0xff]
    %v261 = vld [vmem:[#allocation2 + $0x1d0] sm:$0xf]
    %v262 = vld [vmem:[#allocation2 + $0x1d4] sm:$0xff]
    %v263 = vld [vmem:[#allocation2 + $0x1dc] sm:$0xf]
    %v264 = vld [vmem:[#allocation2 + $0x1e0] sm:$0xff]
    %v265 = vld [vmem:[#allocation2 + $0x1e8] sm:$0xf]
    %v266 = vld [vmem:[#allocation2 + $0x1ec] sm:$0xff]
    %v267 = vld [vmem:[#allocation2 + $0x1f4] sm:$0xf]
    %v268 = vld [vmem:[#allocation2 + $0x1f8] sm:$0xff]
    %v269 = vld [vmem:[#allocation2 + $0x200] sm:$0xf]
    %v270 = vld [vmem:[#allocation2 + $0x204] sm:$0xff]
    %v271 = vld [vmem:[#allocation2 + $0x20c] sm:$0xf]
    %v272 = vld [vmem:[#allocation2 + $0x210] sm:$0xff]
    %v273 = vld [vmem:[#allocation2 + $0x218] sm:$0xf]
    %v274 = vld [vmem:[#allocation2 + $0x21c] sm:$0xff]
    %v275 = vld [vmem:[#allocation2 + $0x224] sm:$0xf]
    %v276 = vld [vmem:[#allocation2 + $0x228] sm:$0xff]
    %v277 = vld [vmem:[#allocation2 + $0x230] sm:$0xf]
    %v278 = vld [vmem:[#allocation2 + $0x234] sm:$0xff]
    %v279 = vld [vmem:[#allocation2 + $0x23c] sm:$0xf]
    %v280 = vld [vmem:[#allocation2 + $0x240] sm:$0xff]
    %v281 = vld [vmem:[#allocation2 + $0x248] sm:$0xf]
    %v282 = vld [vmem:[#allocation2 + $0x24c] sm:$0xff]
    %v283 = vld [vmem:[#allocation2 + $0x254] sm:$0xf]
    %v284 = vld [vmem:[%s4] sm:$0x7]
    %v286 = vlaneseq
    %v287 = vshrl.u32 %v286, 7
    %v288 = vsub.s32 0, %v287
    %v289 = vrot.slane %v284, %v288
    %v290 = vlaneseq
    %v291 = vshrl.u32 %v290, 7
    %v292 = vsub.s32 1, %v291
    %v293 = vrot.slane %v284, %v292
    %v294 = vlaneseq
    %v295 = vshrl.u32 %v294, 7
    %v296 = vsub.s32 2, %v295
    %v297 = vrot.slane %v284, %v296
    %v401 = vunpack.c.l.b16 %v184
    %v402 = vunpack.c.h.b16 %v184
    %v403 = vunpack.c.l.b16 %v185
    %v404 = vunpack.c.l.b16 %v186
    %v405 = vunpack.c.h.b16 %v186
    %v406 = vunpack.c.l.b16 %v187
    %v407 = vunpack.c.l.b16 %v188
    %v408 = vunpack.c.h.b16 %v188
    %v409 = vunpack.c.l.b16 %v189
    %v410 = vunpack.c.l.b16 %v190
    %v411 = vunpack.c.h.b16 %v190
    %v412 = vunpack.c.l.b16 %v191
    %v413 = vunpack.c.l.b16 %v192
    %v414 = vunpack.c.h.b16 %v192
    %v415 = vunpack.c.l.b16 %v193
    %v416 = vunpack.c.l.b16 %v194
    %v417 = vunpack.c.h.b16 %v194
    %v418 = vunpack.c.l.b16 %v195
    %v419 = vunpack.c.l.b16 %v196
    %v420 = vunpack.c.h.b16 %v196
    %v421 = vunpack.c.l.b16 %v197
    %v422 = vunpack.c.l.b16 %v198
    %v423 = vunpack.c.h.b16 %v198
    %v424 = vunpack.c.l.b16 %v199
    %v425 = vunpack.c.l.b16 %v200
    %v426 = vunpack.c.h.b16 %v200
    %v427 = vunpack.c.l.b16 %v201
    %v428 = vunpack.c.l.b16 %v202
    %v429 = vunpack.c.h.b16 %v202
    %v430 = vunpack.c.l.b16 %v203
    %v431 = vunpack.c.l.b16 %v204
    %v432 = vunpack.c.h.b16 %v204
    %v433 = vunpack.c.l.b16 %v205
    %v434 = vunpack.c.l.b16 %v206
    %v435 = vunpack.c.h.b16 %v206
    %v436 = vunpack.c.l.b16 %v207
    %v437 = vunpack.c.l.b16 %v208
    %v438 = vunpack.c.h.b16 %v208
    %v439 = vunpack.c.l.b16 %v209
    %v440 = vunpack.c.l.b16 %v210
    %v441 = vunpack.c.h.b16 %v210
    %v442 = vunpack.c.l.b16 %v211
    %v443 = vunpack.c.l.b16 %v212
    %v444 = vunpack.c.h.b16 %v212
    %v445 = vunpack.c.l.b16 %v213
    %v446 = vunpack.c.l.b16 %v214
    %v447 = vunpack.c.h.b16 %v214
    %v448 = vunpack.c.l.b16 %v215
    %v449 = vunpack.c.l.b16 %v216
    %v450 = vunpack.c.h.b16 %v216
    %v451 = vunpack.c.l.b16 %v217
    %v452 = vunpack.c.l.b16 %v218
    %v453 = vunpack.c.h.b16 %v218
    %v454 = vunpack.c.l.b16 %v219
    %v455 = vunpack.c.l.b16 %v220
    %v456 = vunpack.c.h.b16 %v220
    %v457 = vunpack.c.l.b16 %v221
    %v458 = vunpack.c.l.b16 %v222
    %v459 = vunpack.c.h.b16 %v222
    %v460 = vunpack.c.l.b16 %v223
    %v461 = vunpack.c.l.b16 %v224
    %v462 = vunpack.c.h.b16 %v224
    %v463 = vunpack.c.l.b16 %v225
    %v464 = vunpack.c.l.b16 %v226
    %v465 = vunpack.c.h.b16 %v226
    %v466 = vunpack.c.l.b16 %v227
    %v467 = vunpack.c.l.b16 %v228
    %v468 = vunpack.c.h.b16 %v228
    %v469 = vunpack.c.l.b16 %v229
    %v470 = vunpack.c.l.b16 %v230
    %v471 = vunpack.c.h.b16 %v230
    %v472 = vunpack.c.l.b16 %v231
    %v473 = vunpack.c.l.b16 %v232
    %v474 = vunpack.c.h.b16 %v232
    %v475 = vunpack.c.l.b16 %v233
    %v476 = vunpack.c.l.b16 %v234
    %v477 = vunpack.c.h.b16 %v234
    %v478 = vunpack.c.l.b16 %v235
    %v479 = vunpack.c.l.b16 %v236
    %v480 = vunpack.c.h.b16 %v236
    %v481 = vunpack.c.l.b16 %v237
    %v482 = vunpack.c.l.b16 %v238
    %v483 = vunpack.c.h.b16 %v238
    %v484 = vunpack.c.l.b16 %v239
    %v485 = vunpack.c.l.b16 %v240
    %v486 = vunpack.c.h.b16 %v240
    %v487 = vunpack.c.l.b16 %v241
    %v488 = vunpack.c.l.b16 %v242
    %v489 = vunpack.c.h.b16 %v242
    %v490 = vunpack.c.l.b16 %v243
    %v491 = vunpack.c.l.b16 %v244
    %v492 = vunpack.c.h.b16 %v244
    %v493 = vunpack.c.l.b16 %v245
    %v494 = vunpack.c.l.b16 %v246
    %v495 = vunpack.c.h.b16 %v246
    %v496 = vunpack.c.l.b16 %v247
    %v497 = vunpack.c.l.b16 %v248
    %v498 = vunpack.c.h.b16 %v248
    %v499 = vunpack.c.l.b16 %v249
    %v500 = vunpack.c.l.b16 %v250
    %v501 = vunpack.c.h.b16 %v250
    %v502 = vunpack.c.l.b16 %v251
    %v503 = vunpack.c.l.b16 %v252
    %v504 = vunpack.c.h.b16 %v252
    %v505 = vunpack.c.l.b16 %v253
    %v506 = vunpack.c.l.b16 %v254
    %v507 = vunpack.c.h.b16 %v254
    %v508 = vunpack.c.l.b16 %v255
    %v509 = vunpack.c.l.b16 %v256
    %v510 = vunpack.c.h.b16 %v256
    %v511 = vunpack.c.l.b16 %v257
    %v512 = vunpack.c.l.b16 %v258
    %v513 = vunpack.c.h.b16 %v258
    %v514 = vunpack.c.l.b16 %v259
    %v515 = vunpack.c.l.b16 %v260
    %v516 = vunpack.c.h.b16 %v260
    %v517 = vunpack.c.l.b16 %v261
    %v518 = vunpack.c.l.b16 %v262
    %v519 = vunpack.c.h.b16 %v262
    %v520 = vunpack.c.l.b16 %v263
    %v521 = vunpack.c.l.b16 %v264
    %v522 = vunpack.c.h.b16 %v264
    %v523 = vunpack.c.l.b16 %v265
    %v524 = vunpack.c.l.b16 %v266
    %v525 = vunpack.c.h.b16 %v266
    %v526 = vunpack.c.l.b16 %v267
    %v527 = vunpack.c.l.b16 %v268
    %v528 = vunpack.c.h.b16 %v268
    %v529 = vunpack.c.l.b16 %v269
    %v530 = vunpack.c.l.b16 %v270
    %v531 = vunpack.c.h.b16 %v270
    %v532 = vunpack.c.l.b16 %v271
    %v533 = vunpack.c.l.b16 %v272
    %v534 = vunpack.c.h.b16 %v272
    %v535 = vunpack.c.l.b16 %v273
    %v536 = vunpack.c.l.b16 %v274
    %v537 = vunpack.c.h.b16 %v274
    %v538 = vunpack.c.l.b16 %v275
    %v539 = vunpack.c.l.b16 %v276
    %v540 = vunpack.c.h.b16 %v276
    %v541 = vunpack.c.l.b16 %v277
    %v542 = vunpack.c.l.b16 %v278
    %v543 = vunpack.c.h.b16 %v278
    %v544 = vunpack.c.l.b16 %v279
    %v545 = vunpack.c.l.b16 %v280
    %v546 = vunpack.c.h.b16 %v280
    %v547 = vunpack.c.l.b16 %v281
    %v548 = vunpack.c.l.b16 %v282
    %v549 = vunpack.c.h.b16 %v282
    %v550 = vunpack.c.l.b16 %v283
    %v551 = vpack.c.b16 %v404, %v401
    %v552 = vpack.c.b16 %v405, %v402
    %v553 = vpack.c.b16 %v406, %v403
    %v554 = vpack.c.b16 %v410, %v407
    %v555 = vpack.c.b16 %v411, %v408
    %v556 = vpack.c.b16 %v412, %v409
    %v557 = vpack.c.b16 %v416, %v413
    %v558 = vpack.c.b16 %v417, %v414
    %v559 = vpack.c.b16 %v418, %v415
    %v560 = vpack.c.b16 %v422, %v419
    %v561 = vpack.c.b16 %v423, %v420
    %v562 = vpack.c.b16 %v424, %v421
    %v563 = vpack.c.b16 %v428, %v425
    %v564 = vpack.c.b16 %v429, %v426
    %v565 = vpack.c.b16 %v430, %v427
    %v566 = vpack.c.b16 %v434, %v431
    %v567 = vpack.c.b16 %v435, %v432
    %v568 = vpack.c.b16 %v436, %v433
    %v569 = vpack.c.b16 %v440, %v437
    %v570 = vpack.c.b16 %v441, %v438
    %v571 = vpack.c.b16 %v442, %v439
    %v572 = vpack.c.b16 %v446, %v443
    %v573 = vpack.c.b16 %v447, %v444
    %v574 = vpack.c.b16 %v448, %v445
    %v575 = vpack.c.b16 %v452, %v449
    %v576 = vpack.c.b16 %v453, %v450
    %v577 = vpack.c.b16 %v454, %v451
    %v578 = vpack.c.b16 %v458, %v455
    %v579 = vpack.c.b16 %v459, %v456
    %v580 = vpack.c.b16 %v460, %v457
    %v581 = vpack.c.b16 %v464, %v461
    %v582 = vpack.c.b16 %v465, %v462
    %v583 = vpack.c.b16 %v466, %v463
    %v584 = vpack.c.b16 %v470, %v467
    %v585 = vpack.c.b16 %v471, %v468
    %v586 = vpack.c.b16 %v472, %v469
    %v587 = vpack.c.b16 %v476, %v473
    %v588 = vpack.c.b16 %v477, %v474
    %v589 = vpack.c.b16 %v478, %v475
    %v590 = vpack.c.b16 %v482, %v479
    %v591 = vpack.c.b16 %v483, %v480
    %v592 = vpack.c.b16 %v484, %v481
    %v593 = vpack.c.b16 %v488, %v485
    %v594 = vpack.c.b16 %v489, %v486
    %v595 = vpack.c.b16 %v490, %v487
    %v596 = vpack.c.b16 %v494, %v491
    %v597 = vpack.c.b16 %v495, %v492
    %v598 = vpack.c.b16 %v496, %v493
    %v599 = vpack.c.b16 %v500, %v497
    %v600 = vpack.c.b16 %v501, %v498
    %v601 = vpack.c.b16 %v502, %v499
    %v602 = vpack.c.b16 %v506, %v503
    %v603 = vpack.c.b16 %v507, %v504
    %v604 = vpack.c.b16 %v508, %v505
    %v605 = vpack.c.b16 %v512, %v509
    %v606 = vpack.c.b16 %v513, %v510
    %v607 = vpack.c.b16 %v514, %v511
    %v608 = vpack.c.b16 %v518, %v515
    %v609 = vpack.c.b16 %v519, %v516
    %v610 = vpack.c.b16 %v520, %v517
    %v611 = vpack.c.b16 %v524, %v521
    %v612 = vpack.c.b16 %v525, %v522
    %v613 = vpack.c.b16 %v526, %v523
    %v614 = vpack.c.b16 %v530, %v527
    %v615 = vpack.c.b16 %v531, %v528
    %v616 = vpack.c.b16 %v532, %v529
    %v617 = vpack.c.b16 %v536, %v533
    %v618 = vpack.c.b16 %v537, %v534
    %v619 = vpack.c.b16 %v538, %v535
    %v620 = vpack.c.b16 %v542, %v539
    %v621 = vpack.c.b16 %v543, %v540
    %v622 = vpack.c.b16 %v544, %v541
    %v623 = vpack.c.b16 %v548, %v545
    %v624 = vpack.c.b16 %v549, %v546
    %v625 = vpack.c.b16 %v550, %v547
    %v702 = vsel %vm90, %v183, 0
    %704 = vmatprep.subr.bf16.mxu0 %v552
    %705 = vmatpush1.bf16.msra.mxu0 %v551
    %706 = vmatprep.subr.bf16.mxu0 %v555
    %707 = vmatpush1.bf16.msra.mxu0 %v554
    %708 = vmatprep.subr.bf16.mxu0 %v558
    %709 = vmatpush1.bf16.msra.mxu0 %v557
    %710 = vmatprep.subr.bf16.mxu0 %v561
    %711 = vmatpush1.bf16.msra.mxu0 %v560
    %712 = vmatprep.subr.bf16.mxu0 %v564
    %713 = vmatpush1.bf16.msra.mxu0 %v563
    %714 = vmatprep.subr.bf16.mxu0 %v567
    %715 = vmatpush1.bf16.msra.mxu0 %v566
    %716 = vmatprep.subr.bf16.mxu0 %v570
    %717 = vmatpush1.bf16.msra.mxu0 %v569
    %718 = vmatprep.subr.bf16.mxu0 %v573
    %719 = vmatpush1.bf16.msra.mxu0 %v572
    %720 = vmatprep.subr.bf16.mxu0 %v576
    %721 = vmatpush1.bf16.msra.mxu0 %v575
    %722 = vmatprep.subr.bf16.mxu0 %v579
    %723 = vmatpush1.bf16.msra.mxu0 %v578
    %724 = vmatprep.subr.bf16.mxu0 %v582
    %725 = vmatpush1.bf16.msra.mxu0 %v581
    %726 = vmatprep.subr.bf16.mxu0 %v585
    %727 = vmatpush1.bf16.msra.mxu0 %v584
    %728 = vmatprep.subr.bf16.mxu0 %v588
    %729 = vmatpush1.bf16.msra.mxu0 %v587
    %730 = vmatprep.subr.bf16.mxu0 %v591
    %731 = vmatpush1.bf16.msra.mxu0 %v590
    %732 = vmatprep.subr.bf16.mxu0 %v594
    %733 = vmatpush1.bf16.msra.mxu0 %v593
    %734 = vmatprep.subr.bf16.mxu0 %v597
    %735 = vmatpush1.bf16.msra.mxu0 %v596
    %736 = vmatprep.mubr.bf16.mxu0 %v181
    %737 = vmatmul.mubr.bf16.gmra.mrb[0].mxu0 %v180
    %v738 = vpop.f32.mrb[0].mxu0
    %v739 = vadd.f32 %v289, %v738
    %v740 = vpop.f32.mrb[0].mxu0
    %v741 = vadd.f32 %v293, %v740
    %v742 = vpop.f32.mrb[0].mxu0
    %v743 = vpop.f32.mrb[0].mxu0
    %744 = vdwg.mxu0
    %745 = vmatprep.subr.bf16.mxu0 %v600
    %746 = vmatpush1.bf16.msra.mxu0 %v599
    %747 = vmatprep.subr.bf16.mxu0 %v603
    %748 = vmatpush1.bf16.msra.mxu0 %v602
    %749 = vmatprep.subr.bf16.mxu0 %v606
    %750 = vmatpush1.bf16.msra.mxu0 %v605
    %751 = vmatprep.subr.bf16.mxu0 %v609
    %752 = vmatpush1.bf16.msra.mxu0 %v608
    %753 = vmatprep.subr.bf16.mxu0 %v612
    %754 = vmatpush1.bf16.msra.mxu0 %v611
    %755 = vmatprep.subr.bf16.mxu0 %v615
    %756 = vmatpush1.bf16.msra.mxu0 %v614
    %757 = vmatprep.subr.bf16.mxu0 %v618
    %758 = vmatpush1.bf16.msra.mxu0 %v617
    %759 = vmatprep.subr.bf16.mxu0 %v621
    %760 = vmatpush1.bf16.msra.mxu0 %v620
    %761 = vmatprep.subr.bf16.mxu0 %v624
    %762 = vmatpush1.bf16.msra.mxu0 %v623
    %763 = vmatprep.subr.bf16.mxu0 0
    %764 = vmatpush1.bf16.msra.mxu0 0
    %765 = vmatprep.subr.bf16.mxu0 0
    %766 = vmatpush1.bf16.msra.mxu0 0
    %767 = vmatprep.subr.bf16.mxu0 0
    %768 = vmatpush1.bf16.msra.mxu0 0
    %769 = vmatprep.subr.bf16.mxu0 0
    %770 = vmatpush1.bf16.msra.mxu0 0
    %771 = vmatprep.subr.bf16.mxu0 0
    %772 = vmatpush1.bf16.msra.mxu0 0
    %773 = vmatprep.subr.bf16.mxu0 0
    %774 = vmatpush1.bf16.msra.mxu0 0
    %775 = vmatprep.subr.bf16.mxu0 0
    %776 = vmatpush1.bf16.msra.mxu0 0
    %777 = vmatprep.mubr.bf16.mxu0 %v702
    %778 = vmatmul.mubr.bf16.gmra.mrb[0].mxu0 %v182
    %v779 = vpop.f32.mrb[0].mxu0
    %v780 = vadd.f32 %v739, %v779
    %v781 = vpop.f32.mrb[0].mxu0
    %v782 = vadd.f32 %v741, %v781
    %v783 = vpop.f32.mrb[0].mxu0
    %v784 = vpop.f32.mrb[0].mxu0
    %785 = vdwg.mxu0
    %786 = vmatprep.subr.bf16.mxu0 0
    %787 = vmatpush1.bf16.msra.mxu0 %v553
    %788 = vmatprep.subr.bf16.mxu0 0
    %789 = vmatpush1.bf16.msra.mxu0 %v556
    %790 = vmatprep.subr.bf16.mxu0 0
    %791 = vmatpush1.bf16.msra.mxu0 %v559
    %792 = vmatprep.subr.bf16.mxu0 0
    %793 = vmatpush1.bf16.msra.mxu0 %v562
    %794 = vmatprep.subr.bf16.mxu0 0
    %795 = vmatpush1.bf16.msra.mxu0 %v565
    %796 = vmatprep.subr.bf16.mxu0 0
    %797 = vmatpush1.bf16.msra.mxu0 %v568
    %798 = vmatprep.subr.bf16.mxu0 0
    %799 = vmatpush1.bf16.msra.mxu0 %v571
    %800 = vmatprep.subr.bf16.mxu0 0
    %801 = vmatpush1.bf16.msra.mxu0 %v574
    %802 = vmatprep.subr.bf16.mxu0 0
    %803 = vmatpush1.bf16.msra.mxu0 %v577
    %804 = vmatprep.subr.bf16.mxu0 0
    %805 = vmatpush1.bf16.msra.mxu0 %v580
    %806 = vmatprep.subr.bf16.mxu0 0
    %807 = vmatpush1.bf16.msra.mxu0 %v583
    %808 = vmatprep.subr.bf16.mxu0 0
    %809 = vmatpush1.bf16.msra.mxu0 %v586
    %810 = vmatprep.subr.bf16.mxu0 0
    %811 = vmatpush1.bf16.msra.mxu0 %v589
    %812 = vmatprep.subr.bf16.mxu0 0
    %813 = vmatpush1.bf16.msra.mxu0 %v592
    %814 = vmatprep.subr.bf16.mxu0 0
    %815 = vmatpush1.bf16.msra.mxu0 %v595
    %816 = vmatprep.subr.bf16.mxu0 0
    %817 = vmatpush1.bf16.msra.mxu0 %v598
    %818 = vmatprep.mubr.bf16.mxu0 %v181
    %819 = vmatmul.mubr.bf16.gmra.mrb[0].mxu0 %v180
    %v820 = vpop.f32.mrb[0].mxu0
    %v821 = vadd.f32 %v297, %v820
    %v822 = vpop.f32.mrb[0].mxu0
    %v823 = vpop.f32.mrb[0].mxu0
    %v824 = vpop.f32.mrb[0].mxu0
    %825 = vdwg.mxu0
    %826 = vmatprep.subr.bf16.mxu0 0
    %827 = vmatpush1.bf16.msra.mxu0 %v601
    %828 = vmatprep.subr.bf16.mxu0 0
    %829 = vmatpush1.bf16.msra.mxu0 %v604
    %830 = vmatprep.subr.bf16.mxu0 0
    %831 = vmatpush1.bf16.msra.mxu0 %v607
    %832 = vmatprep.subr.bf16.mxu0 0
    %833 = vmatpush1.bf16.msra.mxu0 %v610
    %834 = vmatprep.subr.bf16.mxu0 0
    %835 = vmatpush1.bf16.msra.mxu0 %v613
    %836 = vmatprep.subr.bf16.mxu0 0
    %837 = vmatpush1.bf16.msra.mxu0 %v616
    %838 = vmatprep.subr.bf16.mxu0 0
    %839 = vmatpush1.bf16.msra.mxu0 %v619
    %840 = vmatprep.subr.bf16.mxu0 0
    %841 = vmatpush1.bf16.msra.mxu0 %v622
    %842 = vmatprep.subr.bf16.mxu0 0
    %843 = vmatpush1.bf16.msra.mxu0 %v625
    %844 = vmatprep.subr.bf16.mxu0 0
    %845 = vmatpush1.bf16.msra.mxu0 0
    %846 = vmatprep.subr.bf16.mxu0 0
    %847 = vmatpush1.bf16.msra.mxu0 0
    %848 = vmatprep.subr.bf16.mxu0 0
    %849 = vmatpush1.bf16.msra.mxu0 0
    %850 = vmatprep.subr.bf16.mxu0 0
    %851 = vmatpush1.bf16.msra.mxu0 0
    %852 = vmatprep.subr.bf16.mxu0 0
    %853 = vmatpush1.bf16.msra.mxu0 0
    %854 = vmatprep.subr.bf16.mxu0 0
    %855 = vmatpush1.bf16.msra.mxu0 0
    %856 = vmatprep.subr.bf16.mxu0 0
    %857 = vmatpush1.bf16.msra.mxu0 0
    %858 = vmatprep.mubr.bf16.mxu0 %v702
    %859 = vmatmul.mubr.bf16.gmra.mrb[0].mxu0 %v182
    %v860 = vpop.f32.mrb[0].mxu0
    %v861 = vadd.f32 %v821, %v860
    %v862 = vpop.f32.mrb[0].mxu0
    %v863 = vpop.f32.mrb[0].mxu0
    %v864 = vpop.f32.mrb[0].mxu0
    %865 = vdwg.mxu0
    %v866 = vmax.f32 %v780, 0.0
    %v867 = vmax.f32 %v782, 0.0
    %v868 = vmax.f32 %v861, 0.0
    %v869 = vpack.c.bf16 %v866, %v866
    %v870 = vpack.c.bf16 %v867, %v867
    %v871 = vpack.c.bf16 %v868, %v868
    %v872 = vld [vmem:[%s5] sm:$0xf]
    %v873 = vld [vmem:[%s5 + $0x4] sm:$0xf]
    %v874 = vld [vmem:[%s5 + $0x8] sm:$0xf]
    %v875 = vld [vmem:[%s5 + $0xc] sm:$0xf]
    %v876 = vld [vmem:[%s5 + $0x10] sm:$0xf]
    %v877 = vld [vmem:[%s5 + $0x14] sm:$0xf]
    %v878 = vld [vmem:[%s5 + $0x18] sm:$0xf]
    %v879 = vld [vmem:[%s5 + $0x1c] sm:$0xf]
    %v880 = vld [vmem:[%s5 + $0x20] sm:$0xf]
    %v881 = vld [vmem:[%s5 + $0x24] sm:$0xf]
    %v882 = vld [vmem:[%s5 + $0x28] sm:$0xf]
    %v883 = vld [vmem:[%s5 + $0x2c] sm:$0xf]
    %v884 = vld [vmem:[%s5 + $0x30] sm:$0xf]
    %v885 = vld [vmem:[%s5 + $0x34] sm:$0xf]
    %v886 = vld [vmem:[%s5 + $0x38] sm:$0xf]
    %v887 = vld [vmem:[%s5 + $0x3c] sm:$0xf]
    %v888 = vld [vmem:[%s5 + $0x40] sm:$0xf]
    %v889 = vld [vmem:[%s5 + $0x44] sm:$0xf]
    %v890 = vld [vmem:[%s5 + $0x48] sm:$0xf]
    %v891 = vld [vmem:[%s5 + $0x4c] sm:$0xf]
    %v892 = vld [vmem:[%s5 + $0x50] sm:$0xf]
    %v893 = vld [vmem:[%s5 + $0x54] sm:$0xf]
    %v894 = vld [vmem:[%s5 + $0x58] sm:$0xf]
    %v895 = vld [vmem:[%s5 + $0x5c] sm:$0xf]
    %v896 = vld [vmem:[%s5 + $0x60] sm:$0xf]
    %v897 = vld [vmem:[%s5 + $0x64] sm:$0xf]
    %v898 = vld [vmem:[%s5 + $0x68] sm:$0xf]
    %v899 = vld [vmem:[%s5 + $0x6c] sm:$0xf]
    %v900 = vld [vmem:[%s5 + $0x70] sm:$0xf]
    %v901 = vld [vmem:[%s5 + $0x74] sm:$0xf]
    %v902 = vld [vmem:[%s5 + $0x78] sm:$0xf]
    %v903 = vld [vmem:[%s5 + $0x7c] sm:$0xf]
    %v904 = vld [vmem:[%s5 + $0x80] sm:$0xf]
    %v905 = vld [vmem:[%s5 + $0x84] sm:$0xf]
    %v906 = vld [vmem:[%s5 + $0x88] sm:$0xf]
    %v907 = vld [vmem:[%s5 + $0x8c] sm:$0xf]
    %v908 = vld [vmem:[%s5 + $0x90] sm:$0xf]
    %v909 = vld [vmem:[%s5 + $0x94] sm:$0x3]
    %v910 = vld [vmem:[%s6] sm:$0x1]
    %v912 = vlaneseq
    %v913 = vshrl.u32 %v912, 7
    %v914 = vsub.s32 0, %v913
    %v915 = vrot.slane %v910, %v914
    %v955 = vunpack.c.l.b16 %v872
    %v956 = vunpack.c.l.b16 %v873
    %v957 = vunpack.c.l.b16 %v874
    %v958 = vunpack.c.l.b16 %v875
    %v959 = vunpack.c.l.b16 %v876
    %v960 = vunpack.c.l.b16 %v877
    %v961 = vunpack.c.l.b16 %v878
    %v962 = vunpack.c.l.b16 %v879
    %v963 = vunpack.c.l.b16 %v880
    %v964 = vunpack.c.l.b16 %v881
    %v965 = vunpack.c.l.b16 %v882
    %v966 = vunpack.c.l.b16 %v883
    %v967 = vunpack.c.l.b16 %v884
    %v968 = vunpack.c.l.b16 %v885
    %v969 = vunpack.c.l.b16 %v886
    %v970 = vunpack.c.l.b16 %v887
    %v971 = vunpack.c.l.b16 %v888
    %v972 = vunpack.c.l.b16 %v889
    %v973 = vunpack.c.l.b16 %v890
    %v974 = vunpack.c.l.b16 %v891
    %v975 = vunpack.c.l.b16 %v892
    %v976 = vunpack.c.l.b16 %v893
    %v977 = vunpack.c.l.b16 %v894
    %v978 = vunpack.c.l.b16 %v895
    %v979 = vunpack.c.l.b16 %v896
    %v980 = vunpack.c.l.b16 %v897
    %v981 = vunpack.c.l.b16 %v898
    %v982 = vunpack.c.l.b16 %v899
    %v983 = vunpack.c.l.b16 %v900
    %v984 = vunpack.c.l.b16 %v901
    %v985 = vunpack.c.l.b16 %v902
    %v986 = vunpack.c.l.b16 %v903
    %v987 = vunpack.c.l.b16 %v904
    %v988 = vunpack.c.l.b16 %v905
    %v989 = vunpack.c.l.b16 %v906
    %v990 = vunpack.c.l.b16 %v907
    %v991 = vunpack.c.l.b16 %v908
    %v992 = vunpack.c.l.b16 %v909
    %v993 = vpack.c.b16 %v956, %v955
    %v994 = vpack.c.b16 %v958, %v957
    %v995 = vpack.c.b16 %v960, %v959
    %v996 = vpack.c.b16 %v962, %v961
    %v997 = vpack.c.b16 %v964, %v963
    %v998 = vpack.c.b16 %v966, %v965
    %v999 = vpack.c.b16 %v968, %v967
    %v1000 = vpack.c.b16 %v970, %v969
    %v1001 = vpack.c.b16 %v972, %v971
    %v1002 = vpack.c.b16 %v974, %v973
    %v1003 = vpack.c.b16 %v976, %v975
    %v1004 = vpack.c.b16 %v978, %v977
    %v1005 = vpack.c.b16 %v980, %v979
    %v1006 = vpack.c.b16 %v982, %v981
    %v1007 = vpack.c.b16 %v984, %v983
    %v1008 = vpack.c.b16 %v986, %v985
    %v1009 = vpack.c.b16 %v988, %v987
    %v1010 = vpack.c.b16 %v990, %v989
    %v1011 = vpack.c.b16 %v992, %v991
    %vm1030 = vcmask 359424
    %v1032 = vsel %vm1030, %v871, 0
    %vm1034 = vcmask 1045504
    %v1036 = vsel %vm1034, %v1011, 0
    %1038 = vmatprep.subr.bf16.mxu0 0
    %1039 = vmatpush1.bf16.msra.mxu0 %v993
    %1040 = vmatprep.subr.bf16.mxu0 0
    %1041 = vmatpush1.bf16.msra.mxu0 %v994
    %1042 = vmatprep.subr.bf16.mxu0 0
    %1043 = vmatpush1.bf16.msra.mxu0 %v995
    %1044 = vmatprep.subr.bf16.mxu0 0
    %1045 = vmatpush1.bf16.msra.mxu0 %v996
    %1046 = vmatprep.subr.bf16.mxu0 0
    %1047 = vmatpush1.bf16.msra.mxu0 %v997
    %1048 = vmatprep.subr.bf16.mxu0 0
    %1049 = vmatpush1.bf16.msra.mxu0 %v998
    %1050 = vmatprep.subr.bf16.mxu0 0
    %1051 = vmatpush1.bf16.msra.mxu0 %v999
    %1052 = vmatprep.subr.bf16.mxu0 0
    %1053 = vmatpush1.bf16.msra.mxu0 %v1000
    %1054 = vmatprep.subr.bf16.mxu0 0
    %1055 = vmatpush1.bf16.msra.mxu0 %v1001
    %1056 = vmatprep.subr.bf16.mxu0 0
    %1057 = vmatpush1.bf16.msra.mxu0 %v1002
    %1058 = vmatprep.subr.bf16.mxu0 0
    %1059 = vmatpush1.bf16.msra.mxu0 %v1003
    %1060 = vmatprep.subr.bf16.mxu0 0
    %1061 = vmatpush1.bf16.msra.mxu0 %v1004
    %1062 = vmatprep.subr.bf16.mxu0 0
    %1063 = vmatpush1.bf16.msra.mxu0 %v1005
    %1064 = vmatprep.subr.bf16.mxu0 0
    %1065 = vmatpush1.bf16.msra.mxu0 %v1006
    %1066 = vmatprep.subr.bf16.mxu0 0
    %1067 = vmatpush1.bf16.msra.mxu0 %v1007
    %1068 = vmatprep.subr.bf16.mxu0 0
    %1069 = vmatpush1.bf16.msra.mxu0 %v1008
    %1070 = vmatprep.mubr.bf16.mxu0 %v870
    %1071 = vmatmul.mubr.bf16.gmra.mrb[0].mxu0 %v869
    %v1072 = vpop.f32.mrb[0].mxu0
    %v1073 = vadd.f32 %v915, %v1072
    %v1074 = vpop.f32.mrb[0].mxu0
    %v1075 = vpop.f32.mrb[0].mxu0
    %v1076 = vpop.f32.mrb[0].mxu0
    %1077 = vdwg.mxu0
    %1078 = vmatprep.subr.bf16.mxu0 0
    %1079 = vmatpush1.bf16.msra.mxu0 %v1009
    %1080 = vmatprep.subr.bf16.mxu0 0
    %1081 = vmatpush1.bf16.msra.mxu0 %v1010
    %1082 = vmatprep.subr.bf16.mxu0 0
    %1083 = vmatpush1.bf16.msra.mxu0 %v1036
    %1084 = vmatprep.subr.bf16.mxu0 0
    %1085 = vmatpush1.bf16.msra.mxu0 0
    %1086 = vmatprep.subr.bf16.mxu0 0
    %1087 = vmatpush1.bf16.msra.mxu0 0
    %1088 = vmatprep.subr.bf16.mxu0 0
    %1089 = vmatpush1.bf16.msra.mxu0 0
    %1090 = vmatprep.subr.bf16.mxu0 0
    %1091 = vmatpush1.bf16.msra.mxu0 0
    %1092 = vmatprep.subr.bf16.mxu0 0
    %1093 = vmatpush1.bf16.msra.mxu0 0
    %1094 = vmatprep.subr.bf16.mxu0 0
    %1095 = vmatpush1.bf16.msra.mxu0 0
    %1096 = vmatprep.subr.bf16.mxu0 0
    %1097 = vmatpush1.bf16.msra.mxu0 0
    %1098 = vmatprep.subr.bf16.mxu0 0
    %1099 = vmatpush1.bf16.msra.mxu0 0
    %1100 = vmatprep.subr.bf16.mxu0 0
    %1101 = vmatpush1.bf16.msra.mxu0 0
    %1102 = vmatprep.subr.bf16.mxu0 0
    %1103 = vmatpush1.bf16.msra.mxu0 0
    %1104 = vmatprep.subr.bf16.mxu0 0
    %1105 = vmatpush1.bf16.msra.mxu0 0
    %1106 = vmatprep.subr.bf16.mxu0 0
    %1107 = vmatpush1.bf16.msra.mxu0 0
    %1108 = vmatprep.subr.bf16.mxu0 0
    %1109 = vmatpush1.bf16.msra.mxu0 0
    %1110 = vmatprep.mubr.bf16.mxu0 0
    %1111 = vmatmul.mubr.bf16.gmra.mrb[0].mxu0 %v1032
    %v1112 = vpop.f32.mrb[0].mxu0
    %v1113 = vadd.f32 %v1073, %v1112
    %v1114 = vpop.f32.mrb[0].mxu0
    %v1115 = vpop.f32.mrb[0].mxu0
    %v1116 = vpop.f32.mrb[0].mxu0
    %1117 = vdwg.mxu0
    %v1118 = vtanh.pop %v1113
    %v1119 = vmul.f32 %v1118, 2.0
    %vm1120 = vcmask 64512
    %1121 = vst.msk [vmem:[#allocation5] sm:$0xff] %vm1120, %v1119
    // Predicated region
    $region34: #{tpu_custom_call.1} parent=1 // pred_check
      _
    $region35: #{tpu_custom_call.1} parent=1 // pred_check_branch
      %1123 = sbr.rel (0) target = $region37
    $region36: #{tpu_custom_call.1} parent=1 // pred_region
      %s1125 = ssub.s32 128, 128
      %1126 = vsyncadd [#allocation4], %s1125
      %s1128 = sshll.u32 [#allocation5], 4
      %s1129 = int_to_ptr.vmem [resolvable:$true] %s1128
      %1131 = dma.vmem_to_hbm [thread:$0]  %s1129, 128, %s7, [#allocation4]
    $region37: #{tpu_custom_call.1} parent=1 // pred_fallthru
      _
    // Predicated region
    $region38: #{tpu_custom_call.1} parent=1 // pred_check
      _
    $region39: #{tpu_custom_call.1} parent=1 // pred_check_branch
      %1133 = sbr.rel (0) target = $region41
    $region40: #{tpu_custom_call.1} parent=1 // pred_region
      %1134 = dma.done [#allocation4], 128
    $region41: #{tpu_custom_call.1} parent=1 // pred_fallthru
      _
    %1135 = vsyncpa [#allocation3], 1
    %1136 = vsyncpa [#allocation4], 1

// kernel: tpu_custom_call.1
$region0: #{tpu_custom_call.1}
  #allocation0 [shape = 'u32[]', space=smem, size = 0x4, offset = 0x4, fixed_abs, tag = 'smem constant byte address 0x4 - core index']
  #allocation1 [shape = 'u32[144,128]{1,0:T(1,128)}', space=vmem, size = 0x12000, scoped, tag = 'internal scratch']
  %s0 = inlined_call_operand.vmem [shape: f32[8,16], index: 0, kind: input, shape index: {}]
  %s1 = inlined_call_operand.vmem [shape: bf16[16,400], index: 1, kind: input, shape index: {}]
  %s2 = inlined_call_operand.vmem [shape: f32[1,400], index: 2, kind: input, shape index: {}]
  %s3 = inlined_call_operand.hbm [shape: bf16[400,300], index: 3, kind: input, shape index: {}]
  %s4 = inlined_call_operand.vmem [shape: f32[1,300], index: 4, kind: input, shape index: {}]
  %s5 = inlined_call_operand.vmem [shape: bf16[300,8], index: 5, kind: input, shape index: {}]
  %s6 = inlined_call_operand.vmem [shape: f32[1,8], index: 6, kind: input, shape index: {}]
  %s7 = inlined_call_operand.hbm [shape: f32[8,8], index: 7, kind: output, shape index: {}]
  %s8 = sld [smem:[#allocation0]]
  $region42: #{tpu_custom_call.1} parent=0
    _
  %s10 = ssub.s32 1, %s8
  %s11 = scalar_select 0, %s10, %s8
  $region1: #{tpu_custom_call.1} parent=0
    #allocation2 [shape = 'u8[307200]{0}', space=vmem, size = 0x4b000, scoped, tag = 'input window, operand 3, single buffered']
    #allocation3 [shape = 's32[1]{0}', space=sflag, size = 0x4, scoped, tag = 'scoped memory for tpu_custom_call.1']
    #allocation4 [shape = 's32[1]{0}', space=sflag, size = 0x4, scoped, tag = 'scoped memory for tpu_custom_call.1']
    #allocation5 [shape = 'u8[4096]{0}', space=vmem, size = 0x1000, scoped, tag = 'output window, operand 0, single buffered']
    %12 = vsyncpa [#allocation3], 0
    %13 = vsyncpa [#allocation4], 0
    // Predicated region
    $region2: #{tpu_custom_call.1} parent=1 // pred_check
      _
    $region3: #{tpu_custom_call.1} parent=1 // pred_check_branch
      %15 = sbr.rel (0) target = $region5
    $region4: #{tpu_custom_call.1} parent=1 // pred_region
      _
    $region5: #{tpu_custom_call.1} parent=1 // pred_fallthru
      _
    // Predicated region
    $region6: #{tpu_custom_call.1} parent=1 // pred_check
      _
    $region7: #{tpu_custom_call.1} parent=1 // pred_check_branch
      %17 = sbr.rel (0) target = $region9
    $region8: #{tpu_custom_call.1} parent=1 // pred_region
      _
    $region9: #{tpu_custom_call.1} parent=1 // pred_fallthru
      _
    // Predicated region
    $region10: #{tpu_custom_call.1} parent=1 // pred_check
      _
    $region11: #{tpu_custom_call.1} parent=1 // pred_check_branch
      %19 = sbr.rel (0) target = $region13
    $region12: #{tpu_custom_call.1} parent=1 // pred_region
      _
    $region13: #{tpu_custom_call.1} parent=1 // pred_fallthru
      _
    // Predicated region
    $region14: #{tpu_custom_call.1} parent=1 // pred_check
      _
    $region15: #{tpu_custom_call.1} parent=1 // pred_check_branch
      %21 = sbr.rel (0) target = $region17
    $region16: #{tpu_custom_call.1} parent=1 // pred_region
      %s23 = ssub.s32 9600, 9600
      %24 = vsyncadd [#allocation3], %s23
      %s25 = sshll.u32 [#allocation2], 4
      %s26 = int_to_ptr.vmem [resolvable:$true] %s25
      %31 = dma.hbm_to_vmem [thread:$0]  %s3, 9600, %s26, [#allocation3], 192, 192, 12
    $region17: #{tpu_custom_call.1} parent=1 // pred_fallthru
      _
    // Predicated region
    $region18: #{tpu_custom_call.1} parent=1 // pred_check
      _
    $region19: #{tpu_custom_call.1} parent=1 // pred_check_branch
      %33 = sbr.rel (0) target = $region21
    $region20: #{tpu_custom_call.1} parent=1 // pred_region
      _
    $region21: #{tpu_custom_call.1} parent=1 // pred_fallthru
      _
    // Predicated region
    $region22: #{tpu_custom_call.1} parent=1 // pred_check
      _
    $region23: #{tpu_custom_call.1} parent=1 // pred_check_branch
      %35 = sbr.rel (0) target = $region25
    $region24: #{tpu_custom_call.1} parent=1 // pred_region
      _
    $region25: #{tpu_custom_call.1} parent=1 // pred_fallthru
      _
    // Predicated region
    $region26: #{tpu_custom_call.1} parent=1 // pred_check
      _
    $region27: #{tpu_custom_call.1} parent=1 // pred_check_branch
      %37 = sbr.rel (0) target = $region29
    $region28: #{tpu_custom_call.1} parent=1 // pred_region
      _
    $region29: #{tpu_custom_call.1} parent=1 // pred_fallthru
      _
    // Predicated region
    $region30: #{tpu_custom_call.1} parent=1 // pred_check
      _
    $region31: #{tpu_custom_call.1} parent=1 // pred_check_branch
      %39 = sbr.rel (0) target = $region33
    $region32: #{tpu_custom_call.1} parent=1 // pred_region
      %40 = dma.done [#allocation3], 9600
    $region33: #{tpu_custom_call.1} parent=1 // pred_fallthru
      _
    %v42 = vld [vmem:[%s0] sm:$0xff]
    %v43 = vpack.c.bf16 %v42, %v42
    %v44 = vld [vmem:[%s1] sm:$0xff]
    %v45 = vld [vmem:[%s1 + $0x8] sm:$0xff]
    %v46 = vld [vmem:[%s1 + $0x10] sm:$0xff]
    %v47 = vld [vmem:[%s1 + $0x18] sm:$0xff]
    %v48 = vld [vmem:[%s2] sm:$0xf]
    %v50 = vlaneseq
    %v51 = vshrl.u32 %v50, 7
    %v52 = vsub.s32 0, %v51
    %v53 = vrot.slane %v48, %v52
    %v54 = vlaneseq
    %v55 = vshrl.u32 %v54, 7
    %v56 = vsub.s32 1, %v55
    %v57 = vrot.slane %v48, %v56
    %v58 = vlaneseq
    %v59 = vshrl.u32 %v58, 7
    %v60 = vsub.s32 2, %v59
    %v61 = vrot.slane %v48, %v60
    %v62 = vlaneseq
    %v63 = vshrl.u32 %v62, 7
    %v64 = vsub.s32 3, %v63
    %v65 = vrot.slane %v48, %v64
    %v74 = vunpack.c.l.b16 %v44
    %v75 = vunpack.c.h.b16 %v44
    %v76 = vunpack.c.l.b16 %v45
    %v77 = vunpack.c.h.b16 %v45
    %v78 = vunpack.c.l.b16 %v46
    %v79 = vunpack.c.h.b16 %v46
    %v80 = vunpack.c.l.b16 %v47
    %v81 = vunpack.c.h.b16 %v47
    %v82 = vpack.c.b16 %v78, %v74
    %v83 = vpack.c.b16 %v79, %v75
    %v84 = vpack.c.b16 %v80, %v76
    %v85 = vpack.c.b16 %v81, %v77
    %vm90 = vcmask 130048
    %v92 = vsel %vm90, %v43, 0
    %94 = vmatprep.subr.bf16.mxu0 %v83
    %95 = vmatpush1.bf16.msra.mxu0 %v82
    %96 = vmatprep.subr.bf16.mxu0 0
    %97 = vmatpush1.bf16.msra.mxu0 0
    %98 = vmatprep.subr.bf16.mxu0 0
    %99 = vmatpush1.bf16.msra.mxu0 0
    %100 = vmatprep.subr.bf16.mxu0 0
    %101 = vmatpush1.bf16.msra.mxu0 0
    %102 = vmatprep.subr.bf16.mxu0 0
    %103 = vmatpush1.bf16.msra.mxu0 0
    %104 = vmatprep.subr.bf16.mxu0 0
    %105 = vmatpush1.bf16.msra.mxu0 0
    %106 = vmatprep.subr.bf16.mxu0 0
    %107 = vmatpush1.bf16.msra.mxu0 0
    %108 = vmatprep.subr.bf16.mxu0 0
    %109 = vmatpush1.bf16.msra.mxu0 0
    %110 = vmatprep.subr.bf16.mxu0 0
    %111 = vmatpush1.bf16.msra.mxu0 0
    %112 = vmatprep.subr.bf16.mxu0 0
    %113 = vmatpush1.bf16.msra.mxu0 0
    %114 = vmatprep.subr.bf16.mxu0 0
    %115 = vmatpush1.bf16.msra.mxu0 0
    %116 = vmatprep.subr.bf16.mxu0 0
    %117 = vmatpush1.bf16.msra.mxu0 0
    %118 = vmatprep.subr.bf16.mxu0 0
    %119 = vmatpush1.bf16.msra.mxu0 0
    %120 = vmatprep.subr.bf16.mxu0 0
    %121 = vmatpush1.bf16.msra.mxu0 0
    %122 = vmatprep.subr.bf16.mxu0 0
    %123 = vmatpush1.bf16.msra.mxu0 0
    %124 = vmatprep.subr.bf16.mxu0 0
    %125 = vmatpush1.bf16.msra.mxu0 0
    %126 = vmatprep.mubr.bf16.mxu0 0
    %127 = vmatmul.mubr.bf16.gmra.mrb[0].mxu0 %v92
    %v128 = vpop.f32.mrb[0].mxu0
    %v129 = vadd.f32 %v53, %v128
    %v130 = vpop.f32.mrb[0].mxu0
    %v131 = vadd.f32 %v57, %v130
    %v132 = vpop.f32.mrb[0].mxu0
    %v133 = vpop.f32.mrb[0].mxu0
    %134 = vdwg.mxu0
    %135 = vmatprep.subr.bf16.mxu0 %v85
    %136 = vmatpush1.bf16.msra.mxu0 %v84
    %137 = vmatprep.subr.bf16.mxu0 0
    %138 = vmatpush1.bf16.msra.mxu0 0
    %139 = vmatprep.subr.bf16.mxu0 0
    %140 = vmatpush1.bf16.msra.mxu0 0
    %141 = vmatprep.subr.bf16.mxu0 0
    %142 = vmatpush1.bf16.msra.mxu0 0
    %143 = vmatprep.subr.bf16.mxu0 0
    %144 = vmatpush1.bf16.msra.mxu0 0
    %145 = vmatprep.subr.bf16.mxu0 0
    %146 = vmatpush1.bf16.msra.mxu0 0
    %147 = vmatprep.subr.bf16.mxu0 0
    %148 = vmatpush1.bf16.msra.mxu0 0
    %149 = vmatprep.subr.bf16.mxu0 0
    %150 = vmatpush1.bf16.msra.mxu0 0
    %151 = vmatprep.subr.bf16.mxu0 0
    %152 = vmatpush1.bf16.msra.mxu0 0
    %153 = vmatprep.subr.bf16.mxu0 0
    %154 = vmatpush1.bf16.msra.mxu0 0
    %155 = vmatprep.subr.bf16.mxu0 0
    %156 = vmatpush1.bf16.msra.mxu0 0
    %157 = vmatprep.subr.bf16.mxu0 0
    %158 = vmatpush1.bf16.msra.mxu0 0
    %159 = vmatprep.subr.bf16.mxu0 0
    %160 = vmatpush1.bf16.msra.mxu0 0
    %161 = vmatprep.subr.bf16.mxu0 0
    %162 = vmatpush1.bf16.msra.mxu0 0
    %163 = vmatprep.subr.bf16.mxu0 0
    %164 = vmatpush1.bf16.msra.mxu0 0
    %165 = vmatprep.subr.bf16.mxu0 0
    %166 = vmatpush1.bf16.msra.mxu0 0
    %167 = vmatprep.mubr.bf16.mxu0 0
    %168 = vmatmul.mubr.bf16.gmra.mrb[0].mxu0 %v92
    %v169 = vpop.f32.mrb[0].mxu0
    %v170 = vadd.f32 %v61, %v169
    %v171 = vpop.f32.mrb[0].mxu0
    %v172 = vadd.f32 %v65, %v171
    %v173 = vpop.f32.mrb[0].mxu0
    %v174 = vpop.f32.mrb[0].mxu0
    %175 = vdwg.mxu0
    %v176 = vmax.f32 %v129, 0.0
    %v177 = vmax.f32 %v131, 0.0
    %v178 = vmax.f32 %v170, 0.0
    %v179 = vmax.f32 %v172, 0.0
    %v180 = vpack.c.bf16 %v176, %v176
    %v181 = vpack.c.bf16 %v177, %v177
    %v182 = vpack.c.bf16 %v178, %v178
    %v183 = vpack.c.bf16 %v179, %v179
    %v184 = vld [vmem:[#allocation2] sm:$0xff]
    %v185 = vld [vmem:[#allocation2 + $0x8] sm:$0xf]
    %v186 = vld [vmem:[#allocation2 + $0xc] sm:$0xff]
    %v187 = vld [vmem:[#allocation2 + $0x14] sm:$0xf]
    %v188 = vld [vmem:[#allocation2 + $0x18] sm:$0xff]
    %v189 = vld [vmem:[#allocation2 + $0x20] sm:$0xf]
    %v190 = vld [vmem:[#allocation2 + $0x24] sm:$0xff]
    %v191 = vld [vmem:[#allocation2 + $0x2c] sm:$0xf]
    %v192 = vld [vmem:[#allocation2 + $0x30] sm:$0xff]
    %v193 = vld [vmem:[#allocation2 + $0x38] sm:$0xf]
    %v194 = vld [vmem:[#allocation2 + $0x3c] sm:$0xff]
    %v195 = vld [vmem:[#allocation2 + $0x44] sm:$0xf]
    %v196 = vld [vmem:[#allocation2 + $0x48] sm:$0xff]
    %v197 = vld [vmem:[#allocation2 + $0x50] sm:$0xf]
    %v198 = vld [vmem:[#allocation2 + $0x54] sm:$0xff]
    %v199 = vld [vmem:[#allocation2 + $0x5c] sm:$0xf]
    %v200 = vld [vmem:[#allocation2 + $0x60] sm:$0xff]
    %v201 = vld [vmem:[#allocation2 + $0x68] sm:$0xf]
    %v202 = vld [vmem:[#allocation2 + $0x6c] sm:$0xff]
    %v203 = vld [vmem:[#allocation2 + $0x74] sm:$0xf]
    %v204 = vld [vmem:[#allocation2 + $0x78] sm:$0xff]
    %v205 = vld [vmem:[#allocation2 + $0x80] sm:$0xf]
    %v206 = vld [vmem:[#allocation2 + $0x84] sm:$0xff]
    %v207 = vld [vmem:[#allocation2 + $0x8c] sm:$0xf]
    %v208 = vld [vmem:[#allocation2 + $0x90] sm:$0xff]
    %v209 = vld [vmem:[#allocation2 + $0x98] sm:$0xf]
    %v210 = vld [vmem:[#allocation2 + $0x9c] sm:$0xff]
    %v211 = vld [vmem:[#allocation2 + $0xa4] sm:$0xf]
    %v212 = vld [vmem:[#allocation2 + $0xa8] sm:$0xff]
    %v213 = vld [vmem:[#allocation2 + $0xb0] sm:$0xf]
    %v214 = vld [vmem:[#allocation2 + $0xb4] sm:$0xff]
    %v215 = vld [vmem:[#allocation2 + $0xbc] sm:$0xf]
    %v216 = vld [vmem:[#allocation2 + $0xc0] sm:$0xff]
    %v217 = vld [vmem:[#allocation2 + $0xc8] sm:$0xf]
    %v218 = vld [vmem:[#allocation2 + $0xcc] sm:$0xff]
    %v219 = vld [vmem:[#allocation2 + $0xd4] sm:$0xf]
    %v220 = vld [vmem:[#allocation2 + $0xd8] sm:$0xff]
    %v221 = vld [vmem:[#allocation2 + $0xe0] sm:$0xf]
    %v222 = vld [vmem:[#allocation2 + $0xe4] sm:$0xff]
    %v223 = vld [vmem:[#allocation2 + $0xec] sm:$0xf]
    %v224 = vld [vmem:[#allocation2 + $0xf0] sm:$0xff]
    %v225 = vld [vmem:[#allocation2 + $0xf8] sm:$0xf]
    %v226 = vld [vmem:[#allocation2 + $0xfc] sm:$0xff]
    %v227 = vld [vmem:[#allocation2 + $0x104] sm:$0xf]
    %v228 = vld [vmem:[#allocation2 + $0x108] sm:$0xff]
    %v229 = vld [vmem:[#allocation2 + $0x110] sm:$0xf]
    %v230 = vld [vmem:[#allocation2 + $0x114] sm:$0xff]
    %v231 = vld [vmem:[#allocation2 + $0x11c] sm:$0xf]
    %v232 = vld [vmem:[#allocation2 + $0x120] sm:$0xff]
    %v233 = vld [vmem:[#allocation2 + $0x128] sm:$0xf]
    %v234 = vld [vmem:[#allocation2 + $0x12c] sm:$0xff]
    %v235 = vld [vmem:[#allocation2 + $0x134] sm:$0xf]
    %v236 = vld [vmem:[#allocation2 + $0x138] sm:$0xff]
    %v237 = vld [vmem:[#allocation2 + $0x140] sm:$0xf]
    %v238 = vld [vmem:[#allocation2 + $0x144] sm:$0xff]
    %v239 = vld [vmem:[#allocation2 + $0x14c] sm:$0xf]
    %v240 = vld [vmem:[#allocation2 + $0x150] sm:$0xff]
    %v241 = vld [vmem:[#allocation2 + $0x158] sm:$0xf]
    %v242 = vld [vmem:[#allocation2 + $0x15c] sm:$0xff]
    %v243 = vld [vmem:[#allocation2 + $0x164] sm:$0xf]
    %v244 = vld [vmem:[#allocation2 + $0x168] sm:$0xff]
    %v245 = vld [vmem:[#allocation2 + $0x170] sm:$0xf]
    %v246 = vld [vmem:[#allocation2 + $0x174] sm:$0xff]
    %v247 = vld [vmem:[#allocation2 + $0x17c] sm:$0xf]
    %v248 = vld [vmem:[#allocation2 + $0x180] sm:$0xff]
    %v249 = vld [vmem:[#allocation2 + $0x188] sm:$0xf]
    %v250 = vld [vmem:[#allocation2 + $0x18c] sm:$0xff]
    %v251 = vld [vmem:[#allocation2 + $0x194] sm:$0xf]
    %v252 = vld [vmem:[#allocation2 + $0x198] sm:$0xff]
    %v253 = vld [vmem:[#allocation2 + $0x1a0] sm:$0xf]
    %v254 = vld [vmem:[#allocation2 + $0x1a4] sm:$0xff]
    %v255 = vld [vmem:[#allocation2 + $0x1ac] sm:$0xf]
    %v256 = vld [vmem:[#allocation2 + $0x1b0] sm:$0xff]
    %v257 = vld [vmem:[#allocation2 + $0x1b8] sm:$0xf]
    %v258 = vld [vmem:[#allocation2 + $0x1bc] sm:$0xff]
    %v259 = vld [vmem:[#allocation2 + $0x1c4] sm:$0xf]
    %v260 = vld [vmem:[#allocation2 + $0x1c8] sm:$0xff]
    %v261 = vld [vmem:[#allocation2 + $0x1d0] sm:$0xf]
    %v262 = vld [vmem:[#allocation2 + $0x1d4] sm:$0xff]
    %v263 = vld [vmem:[#allocation2 + $0x1dc] sm:$0xf]
    %v264 = vld [vmem:[#allocation2 + $0x1e0] sm:$0xff]
    %v265 = vld [vmem:[#allocation2 + $0x1e8] sm:$0xf]
    %v266 = vld [vmem:[#allocation2 + $0x1ec] sm:$0xff]
    %v267 = vld [vmem:[#allocation2 + $0x1f4] sm:$0xf]
    %v268 = vld [vmem:[#allocation2 + $0x1f8] sm:$0xff]
    %v269 = vld [vmem:[#allocation2 + $0x200] sm:$0xf]
    %v270 = vld [vmem:[#allocation2 + $0x204] sm:$0xff]
    %v271 = vld [vmem:[#allocation2 + $0x20c] sm:$0xf]
    %v272 = vld [vmem:[#allocation2 + $0x210] sm:$0xff]
    %v273 = vld [vmem:[#allocation2 + $0x218] sm:$0xf]
    %v274 = vld [vmem:[#allocation2 + $0x21c] sm:$0xff]
    %v275 = vld [vmem:[#allocation2 + $0x224] sm:$0xf]
    %v276 = vld [vmem:[#allocation2 + $0x228] sm:$0xff]
    %v277 = vld [vmem:[#allocation2 + $0x230] sm:$0xf]
    %v278 = vld [vmem:[#allocation2 + $0x234] sm:$0xff]
    %v279 = vld [vmem:[#allocation2 + $0x23c] sm:$0xf]
    %v280 = vld [vmem:[#allocation2 + $0x240] sm:$0xff]
    %v281 = vld [vmem:[#allocation2 + $0x248] sm:$0xf]
    %v282 = vld [vmem:[#allocation2 + $0x24c] sm:$0xff]
    %v283 = vld [vmem:[#allocation2 + $0x254] sm:$0xf]
    %v284 = vld [vmem:[%s4] sm:$0x7]
    %v286 = vlaneseq
    %v287 = vshrl.u32 %v286, 7
    %v288 = vsub.s32 0, %v287
    %v289 = vrot.slane %v284, %v288
    %v290 = vlaneseq
    %v291 = vshrl.u32 %v290, 7
    %v292 = vsub.s32 1, %v291
    %v293 = vrot.slane %v284, %v292
    %v294 = vlaneseq
    %v295 = vshrl.u32 %v294, 7
    %v296 = vsub.s32 2, %v295
    %v297 = vrot.slane %v284, %v296
    %v401 = vunpack.c.l.b16 %v184
    %v402 = vunpack.c.h.b16 %v184
    %v403 = vunpack.c.l.b16 %v185
    %v404 = vunpack.c.l.b16 %v186
    %v405 = vunpack.c.h.b16 %v186
    %v406 = vunpack.c.l.b16 %v187
    %v407 = vunpack.c.l.b16 %v188
    %v408 = vunpack.c.h.b16 %v188
    %v409 = vunpack.c.l.b16 %v189
    %v410 = vunpack.c.l.b16 %v190
    %v411 = vunpack.c.h.b16 %v190
    %v412 = vunpack.c.l.b16 %v191
    %v413 = vunpack.c.l.b16 %v192
    %v414 = vunpack.c.h.b16 %v192
    %v415 = vunpack.c.l.b16 %v193
    %v416 = vunpack.c.l.b16 %v194
    %v417 = vunpack.c.h.b16 %v194
    %v418 = vunpack.c.l.b16 %v195
    %v419 = vunpack.c.l.b16 %v196
    %v420 = vunpack.c.h.b16 %v196
    %v421 = vunpack.c.l.b16 %v197
    %v422 = vunpack.c.l.b16 %v198
    %v423 = vunpack.c.h.b16 %v198
    %v424 = vunpack.c.l.b16 %v199
    %v425 = vunpack.c.l.b16 %v200
    %v426 = vunpack.c.h.b16 %v200
    %v427 = vunpack.c.l.b16 %v201
    %v428 = vunpack.c.l.b16 %v202
    %v429 = vunpack.c.h.b16 %v202
    %v430 = vunpack.c.l.b16 %v203
    %v431 = vunpack.c.l.b16 %v204
    %v432 = vunpack.c.h.b16 %v204
    %v433 = vunpack.c.l.b16 %v205
    %v434 = vunpack.c.l.b16 %v206
    %v435 = vunpack.c.h.b16 %v206
    %v436 = vunpack.c.l.b16 %v207
    %v437 = vunpack.c.l.b16 %v208
    %v438 = vunpack.c.h.b16 %v208
    %v439 = vunpack.c.l.b16 %v209
    %v440 = vunpack.c.l.b16 %v210
    %v441 = vunpack.c.h.b16 %v210
    %v442 = vunpack.c.l.b16 %v211
    %v443 = vunpack.c.l.b16 %v212
    %v444 = vunpack.c.h.b16 %v212
    %v445 = vunpack.c.l.b16 %v213
    %v446 = vunpack.c.l.b16 %v214
    %v447 = vunpack.c.h.b16 %v214
    %v448 = vunpack.c.l.b16 %v215
    %v449 = vunpack.c.l.b16 %v216
    %v450 = vunpack.c.h.b16 %v216
    %v451 = vunpack.c.l.b16 %v217
    %v452 = vunpack.c.l.b16 %v218
    %v453 = vunpack.c.h.b16 %v218
    %v454 = vunpack.c.l.b16 %v219
    %v455 = vunpack.c.l.b16 %v220
    %v456 = vunpack.c.h.b16 %v220
    %v457 = vunpack.c.l.b16 %v221
    %v458 = vunpack.c.l.b16 %v222
    %v459 = vunpack.c.h.b16 %v222
    %v460 = vunpack.c.l.b16 %v223
    %v461 = vunpack.c.l.b16 %v224
    %v462 = vunpack.c.h.b16 %v224
    %v463 = vunpack.c.l.b16 %v225
    %v464 = vunpack.c.l.b16 %v226
    %v465 = vunpack.c.h.b16 %v226
    %v466 = vunpack.c.l.b16 %v227
    %v467 = vunpack.c.l.b16 %v228
    %v468 = vunpack.c.h.b16 %v228
    %v469 = vunpack.c.l.b16 %v229
    %v470 = vunpack.c.l.b16 %v230
    %v471 = vunpack.c.h.b16 %v230
    %v472 = vunpack.c.l.b16 %v231
    %v473 = vunpack.c.l.b16 %v232
    %v474 = vunpack.c.h.b16 %v232
    %v475 = vunpack.c.l.b16 %v233
    %v476 = vunpack.c.l.b16 %v234
    %v477 = vunpack.c.h.b16 %v234
    %v478 = vunpack.c.l.b16 %v235
    %v479 = vunpack.c.l.b16 %v236
    %v480 = vunpack.c.h.b16 %v236
    %v481 = vunpack.c.l.b16 %v237
    %v482 = vunpack.c.l.b16 %v238
    %v483 = vunpack.c.h.b16 %v238
    %v484 = vunpack.c.l.b16 %v239
    %v485 = vunpack.c.l.b16 %v240
    %v486 = vunpack.c.h.b16 %v240
    %v487 = vunpack.c.l.b16 %v241
    %v488 = vunpack.c.l.b16 %v242
    %v489 = vunpack.c.h.b16 %v242
    %v490 = vunpack.c.l.b16 %v243
    %v491 = vunpack.c.l.b16 %v244
    %v492 = vunpack.c.h.b16 %v244
    %v493 = vunpack.c.l.b16 %v245
    %v494 = vunpack.c.l.b16 %v246
    %v495 = vunpack.c.h.b16 %v246
    %v496 = vunpack.c.l.b16 %v247
    %v497 = vunpack.c.l.b16 %v248
    %v498 = vunpack.c.h.b16 %v248
    %v499 = vunpack.c.l.b16 %v249
    %v500 = vunpack.c.l.b16 %v250
    %v501 = vunpack.c.h.b16 %v250
    %v502 = vunpack.c.l.b16 %v251
    %v503 = vunpack.c.l.b16 %v252
    %v504 = vunpack.c.h.b16 %v252
    %v505 = vunpack.c.l.b16 %v253
    %v506 = vunpack.c.l.b16 %v254
    %v507 = vunpack.c.h.b16 %v254
    %v508 = vunpack.c.l.b16 %v255
    %v509 = vunpack.c.l.b16 %v256
    %v510 = vunpack.c.h.b16 %v256
    %v511 = vunpack.c.l.b16 %v257
    %v512 = vunpack.c.l.b16 %v258
    %v513 = vunpack.c.h.b16 %v258
    %v514 = vunpack.c.l.b16 %v259
    %v515 = vunpack.c.l.b16 %v260
    %v516 = vunpack.c.h.b16 %v260
    %v517 = vunpack.c.l.b16 %v261
    %v518 = vunpack.c.l.b16 %v262
    %v519 = vunpack.c.h.b16 %v262
    %v520 = vunpack.c.l.b16 %v263
    %v521 = vunpack.c.l.b16 %v264
    %v522 = vunpack.c.h.b16 %v264
    %v523 = vunpack.c.l.b16 %v265
    %v524 = vunpack.c.l.b16 %v266
    %v525 = vunpack.c.h.b16 %v266
    %v526 = vunpack.c.l.b16 %v267
    %v527 = vunpack.c.l.b16 %v268
    %v528 = vunpack.c.h.b16 %v268
    %v529 = vunpack.c.l.b16 %v269
    %v530 = vunpack.c.l.b16 %v270
    %v531 = vunpack.c.h.b16 %v270
    %v532 = vunpack.c.l.b16 %v271
    %v533 = vunpack.c.l.b16 %v272
    %v534 = vunpack.c.h.b16 %v272
    %v535 = vunpack.c.l.b16 %v273
    %v536 = vunpack.c.l.b16 %v274
    %v537 = vunpack.c.h.b16 %v274
    %v538 = vunpack.c.l.b16 %v275
    %v539 = vunpack.c.l.b16 %v276
    %v540 = vunpack.c.h.b16 %v276
    %v541 = vunpack.c.l.b16 %v277
    %v542 = vunpack.c.l.b16 %v278
    %v543 = vunpack.c.h.b16 %v278
    %v544 = vunpack.c.l.b16 %v279
    %v545 = vunpack.c.l.b16 %v280
    %v546 = vunpack.c.h.b16 %v280
    %v547 = vunpack.c.l.b16 %v281
    %v548 = vunpack.c.l.b16 %v282
    %v549 = vunpack.c.h.b16 %v282
    %v550 = vunpack.c.l.b16 %v283
    %v551 = vpack.c.b16 %v404, %v401
    %v552 = vpack.c.b16 %v405, %v402
    %v553 = vpack.c.b16 %v406, %v403
    %v554 = vpack.c.b16 %v410, %v407
    %v555 = vpack.c.b16 %v411, %v408
    %v556 = vpack.c.b16 %v412, %v409
    %v557 = vpack.c.b16 %v416, %v413
    %v558 = vpack.c.b16 %v417, %v414
    %v559 = vpack.c.b16 %v418, %v415
    %v560 = vpack.c.b16 %v422, %v419
    %v561 = vpack.c.b16 %v423, %v420
    %v562 = vpack.c.b16 %v424, %v421
    %v563 = vpack.c.b16 %v428, %v425
    %v564 = vpack.c.b16 %v429, %v426
    %v565 = vpack.c.b16 %v430, %v427
    %v566 = vpack.c.b16 %v434, %v431
    %v567 = vpack.c.b16 %v435, %v432
    %v568 = vpack.c.b16 %v436, %v433
    %v569 = vpack.c.b16 %v440, %v437
    %v570 = vpack.c.b16 %v441, %v438
    %v571 = vpack.c.b16 %v442, %v439
    %v572 = vpack.c.b16 %v446, %v443
    %v573 = vpack.c.b16 %v447, %v444
    %v574 = vpack.c.b16 %v448, %v445
    %v575 = vpack.c.b16 %v452, %v449
    %v576 = vpack.c.b16 %v453, %v450
    %v577 = vpack.c.b16 %v454, %v451
    %v578 = vpack.c.b16 %v458, %v455
    %v579 = vpack.c.b16 %v459, %v456
    %v580 = vpack.c.b16 %v460, %v457
    %v581 = vpack.c.b16 %v464, %v461
    %v582 = vpack.c.b16 %v465, %v462
    %v583 = vpack.c.b16 %v466, %v463
    %v584 = vpack.c.b16 %v470, %v467
    %v585 = vpack.c.b16 %v471, %v468
    %v586 = vpack.c.b16 %v472, %v469
    %v587 = vpack.c.b16 %v476, %v473
    %v588 = vpack.c.b16 %v477, %v474
    %v589 = vpack.c.b16 %v478, %v475
    %v590 = vpack.c.b16 %v482, %v479
    %v591 = vpack.c.b16 %v483, %v480
    %v592 = vpack.c.b16 %v484, %v481
    %v593 = vpack.c.b16 %v488, %v485
    %v594 = vpack.c.b16 %v489, %v486
    %v595 = vpack.c.b16 %v490, %v487
    %v596 = vpack.c.b16 %v494, %v491
    %v597 = vpack.c.b16 %v495, %v492
    %v598 = vpack.c.b16 %v496, %v493
    %v599 = vpack.c.b16 %v500, %v497
    %v600 = vpack.c.b16 %v501, %v498
    %v601 = vpack.c.b16 %v502, %v499
    %v602 = vpack.c.b16 %v506, %v503
    %v603 = vpack.c.b16 %v507, %v504
    %v604 = vpack.c.b16 %v508, %v505
    %v605 = vpack.c.b16 %v512, %v509
    %v606 = vpack.c.b16 %v513, %v510
    %v607 = vpack.c.b16 %v514, %v511
    %v608 = vpack.c.b16 %v518, %v515
    %v609 = vpack.c.b16 %v519, %v516
    %v610 = vpack.c.b16 %v520, %v517
    %v611 = vpack.c.b16 %v524, %v521
    %v612 = vpack.c.b16 %v525, %v522
    %v613 = vpack.c.b16 %v526, %v523
    %v614 = vpack.c.b16 %v530, %v527
    %v615 = vpack.c.b16 %v531, %v528
    %v616 = vpack.c.b16 %v532, %v529
    %v617 = vpack.c.b16 %v536, %v533
    %v618 = vpack.c.b16 %v537, %v534
    %v619 = vpack.c.b16 %v538, %v535
    %v620 = vpack.c.b16 %v542, %v539
    %v621 = vpack.c.b16 %v543, %v540
    %v622 = vpack.c.b16 %v544, %v541
    %v623 = vpack.c.b16 %v548, %v545
    %v624 = vpack.c.b16 %v549, %v546
    %v625 = vpack.c.b16 %v550, %v547
    %v702 = vsel %vm90, %v183, 0
    %704 = vmatprep.subr.bf16.mxu0 %v552
    %705 = vmatpush1.bf16.msra.mxu0 %v551
    %706 = vmatprep.subr.bf16.mxu0 %v555
    %707 = vmatpush1.bf16.msra.mxu0 %v554
    %708 = vmatprep.subr.bf16.mxu0 %v558
    %709 = vmatpush1.bf16.msra.mxu0 %v557
    %710 = vmatprep.subr.bf16.mxu0 %v561
    %711 = vmatpush1.bf16.msra.mxu0 %v560
    %712 = vmatprep.subr.bf16.mxu0 %v564
    %713 = vmatpush1.bf16.msra.mxu0 %v563
    %714 = vmatprep.subr.bf16.mxu0 %v567
    %715 = vmatpush1.bf16.msra.mxu0 %v566
    %716 = vmatprep.subr.bf16.mxu0 %v570
    %717 = vmatpush1.bf16.msra.mxu0 %v569
    %718 = vmatprep.subr.bf16.mxu0 %v573
    %719 = vmatpush1.bf16.msra.mxu0 %v572
    %720 = vmatprep.subr.bf16.mxu0 %v576
    %721 = vmatpush1.bf16.msra.mxu0 %v575
    %722 = vmatprep.subr.bf16.mxu0 %v579
    %723 = vmatpush1.bf16.msra.mxu0 %v578
    %724 = vmatprep.subr.bf16.mxu0 %v582
    %725 = vmatpush1.bf16.msra.mxu0 %v581
    %726 = vmatprep.subr.bf16.mxu0 %v585
    %727 = vmatpush1.bf16.msra.mxu0 %v584
    %728 = vmatprep.subr.bf16.mxu0 %v588
    %729 = vmatpush1.bf16.msra.mxu0 %v587
    %730 = vmatprep.subr.bf16.mxu0 %v591
    %731 = vmatpush1.bf16.msra.mxu0 %v590
    %732 = vmatprep.subr.bf16.mxu0 %v594
    %733 = vmatpush1.bf16.msra.mxu0 %v593
    %734 = vmatprep.subr.bf16.mxu0 %v597
    %735 = vmatpush1.bf16.msra.mxu0 %v596
    %736 = vmatprep.mubr.bf16.mxu0 %v181
    %737 = vmatmul.mubr.bf16.gmra.mrb[0].mxu0 %v180
    %v738 = vpop.f32.mrb[0].mxu0
    %v739 = vadd.f32 %v289, %v738
    %v740 = vpop.f32.mrb[0].mxu0
    %v741 = vadd.f32 %v293, %v740
    %v742 = vpop.f32.mrb[0].mxu0
    %v743 = vpop.f32.mrb[0].mxu0
    %744 = vdwg.mxu0
    %745 = vmatprep.subr.bf16.mxu0 %v600
    %746 = vmatpush1.bf16.msra.mxu0 %v599
    %747 = vmatprep.subr.bf16.mxu0 %v603
    %748 = vmatpush1.bf16.msra.mxu0 %v602
    %749 = vmatprep.subr.bf16.mxu0 %v606
    %750 = vmatpush1.bf16.msra.mxu0 %v605
    %751 = vmatprep.subr.bf16.mxu0 %v609
    %752 = vmatpush1.bf16.msra.mxu0 %v608
    %753 = vmatprep.subr.bf16.mxu0 %v612
    %754 = vmatpush1.bf16.msra.mxu0 %v611
    %755 = vmatprep.subr.bf16.mxu0 %v615
    %756 = vmatpush1.bf16.msra.mxu0 %v614
    %757 = vmatprep.subr.bf16.mxu0 %v618
    %758 = vmatpush1.bf16.msra.mxu0 %v617
    %759 = vmatprep.subr.bf16.mxu0 %v621
    %760 = vmatpush1.bf16.msra.mxu0 %v620
    %761 = vmatprep.subr.bf16.mxu0 %v624
    %762 = vmatpush1.bf16.msra.mxu0 %v623
    %763 = vmatprep.subr.bf16.mxu0 0
    %764 = vmatpush1.bf16.msra.mxu0 0
    %765 = vmatprep.subr.bf16.mxu0 0
    %766 = vmatpush1.bf16.msra.mxu0 0
    %767 = vmatprep.subr.bf16.mxu0 0
    %768 = vmatpush1.bf16.msra.mxu0 0
    %769 = vmatprep.subr.bf16.mxu0 0
    %770 = vmatpush1.bf16.msra.mxu0 0
    %771 = vmatprep.subr.bf16.mxu0 0
    %772 = vmatpush1.bf16.msra.mxu0 0
    %773 = vmatprep.subr.bf16.mxu0 0
    %774 = vmatpush1.bf16.msra.mxu0 0
    %775 = vmatprep.subr.bf16.mxu0 0
    %776 = vmatpush1.bf16.msra.mxu0 0
    %777 = vmatprep.mubr.bf16.mxu0 %v702
    %778 = vmatmul.mubr.bf16.gmra.mrb[0].mxu0 %v182
    %v779 = vpop.f32.mrb[0].mxu0
    %v780 = vadd.f32 %v739, %v779
    %v781 = vpop.f32.mrb[0].mxu0
    %v782 = vadd.f32 %v741, %v781
    %v783 = vpop.f32.mrb[0].mxu0
    %v784 = vpop.f32.mrb[0].mxu0
    %785 = vdwg.mxu0
    %786 = vmatprep.subr.bf16.mxu0 0
    %787 = vmatpush1.bf16.msra.mxu0 %v553
    %788 = vmatprep.subr.bf16.mxu0 0
    %789 = vmatpush1.bf16.msra.mxu0 %v556
    %790 = vmatprep.subr.bf16.mxu0 0
    %791 = vmatpush1.bf16.msra.mxu0 %v559
    %792 = vmatprep.subr.bf16.mxu0 0
    %793 = vmatpush1.bf16.msra.mxu0 %v562
    %794 = vmatprep.subr.bf16.mxu0 0
    %795 = vmatpush1.bf16.msra.mxu0 %v565
    %796 = vmatprep.subr.bf16.mxu0 0
    %797 = vmatpush1.bf16.msra.mxu0 %v568
    %798 = vmatprep.subr.bf16.mxu0 0
    %799 = vmatpush1.bf16.msra.mxu0 %v571
    %800 = vmatprep.subr.bf16.mxu0 0
    %801 = vmatpush1.bf16.msra.mxu0 %v574
    %802 = vmatprep.subr.bf16.mxu0 0
    %803 = vmatpush1.bf16.msra.mxu0 %v577
    %804 = vmatprep.subr.bf16.mxu0 0
    %805 = vmatpush1.bf16.msra.mxu0 %v580
    %806 = vmatprep.subr.bf16.mxu0 0
    %807 = vmatpush1.bf16.msra.mxu0 %v583
    %808 = vmatprep.subr.bf16.mxu0 0
    %809 = vmatpush1.bf16.msra.mxu0 %v586
    %810 = vmatprep.subr.bf16.mxu0 0
    %811 = vmatpush1.bf16.msra.mxu0 %v589
    %812 = vmatprep.subr.bf16.mxu0 0
    %813 = vmatpush1.bf16.msra.mxu0 %v592
    %814 = vmatprep.subr.bf16.mxu0 0
    %815 = vmatpush1.bf16.msra.mxu0 %v595
    %816 = vmatprep.subr.bf16.mxu0 0
    %817 = vmatpush1.bf16.msra.mxu0 %v598
    %818 = vmatprep.mubr.bf16.mxu0 %v181
    %819 = vmatmul.mubr.bf16.gmra.mrb[0].mxu0 %v180
    %v820 = vpop.f32.mrb[0].mxu0
    %v821 = vadd.f32 %v297, %v820
    %v822 = vpop.f32.mrb[0].mxu0
    %v823 = vpop.f32.mrb[0].mxu0
    %v824 = vpop.f32.mrb[0].mxu0
    %825 = vdwg.mxu0
    %826 = vmatprep.subr.bf16.mxu0 0
    %827 = vmatpush1.bf16.msra.mxu0 %v601
    %828 = vmatprep.subr.bf16.mxu0 0
    %829 = vmatpush1.bf16.msra.mxu0 %v604
    %830 = vmatprep.subr.bf16.mxu0 0
    %831 = vmatpush1.bf16.msra.mxu0 %v607
    %832 = vmatprep.subr.bf16.mxu0 0
    %833 = vmatpush1.bf16.msra.mxu0 %v610
    %834 = vmatprep.subr.bf16.mxu0 0
    %835 = vmatpush1.bf16.msra.mxu0 %v613
    %836 = vmatprep.subr.bf16.mxu0 0
    %837 = vmatpush1.bf16.msra.mxu0 %v616
    %838 = vmatprep.subr.bf16.mxu0 0
    %839 = vmatpush1.bf16.msra.mxu0 %v619
    %840 = vmatprep.subr.bf16.mxu0 0
    %841 = vmatpush1.bf16.msra.mxu0 %v622
    %842 = vmatprep.subr.bf16.mxu0 0
    %843 = vmatpush1.bf16.msra.mxu0 %v625
    %844 = vmatprep.subr.bf16.mxu0 0
    %845 = vmatpush1.bf16.msra.mxu0 0
    %846 = vmatprep.subr.bf16.mxu0 0
    %847 = vmatpush1.bf16.msra.mxu0 0
    %848 = vmatprep.subr.bf16.mxu0 0
    %849 = vmatpush1.bf16.msra.mxu0 0
    %850 = vmatprep.subr.bf16.mxu0 0
    %851 = vmatpush1.bf16.msra.mxu0 0
    %852 = vmatprep.subr.bf16.mxu0 0
    %853 = vmatpush1.bf16.msra.mxu0 0
    %854 = vmatprep.subr.bf16.mxu0 0
    %855 = vmatpush1.bf16.msra.mxu0 0
    %856 = vmatprep.subr.bf16.mxu0 0
    %857 = vmatpush1.bf16.msra.mxu0 0
    %858 = vmatprep.mubr.bf16.mxu0 %v702
    %859 = vmatmul.mubr.bf16.gmra.mrb[0].mxu0 %v182
    %v860 = vpop.f32.mrb[0].mxu0
    %v861 = vadd.f32 %v821, %v860
    %v862 = vpop.f32.mrb[0].mxu0
    %v863 = vpop.f32.mrb[0].mxu0
    %v864 = vpop.f32.mrb[0].mxu0
    %865 = vdwg.mxu0
    %v866 = vmax.f32 %v780, 0.0
    %v867 = vmax.f32 %v782, 0.0
    %v868 = vmax.f32 %v861, 0.0
    %v869 = vpack.c.bf16 %v866, %v866
    %v870 = vpack.c.bf16 %v867, %v867
    %v871 = vpack.c.bf16 %v868, %v868
    %v872 = vld [vmem:[%s5] sm:$0xf]
    %v873 = vld [vmem:[%s5 + $0x4] sm:$0xf]
    %v874 = vld [vmem:[%s5 + $0x8] sm:$0xf]
    %v875 = vld [vmem:[%s5 + $0xc] sm:$0xf]
    %v876 = vld [vmem:[%s5 + $0x10] sm:$0xf]
    %v877 = vld [vmem:[%s5 + $0x14] sm:$0xf]
    %v878 = vld [vmem:[%s5 + $0x18] sm:$0xf]
    %v879 = vld [vmem:[%s5 + $0x1c] sm:$0xf]
    %v880 = vld [vmem:[%s5 + $0x20] sm:$0xf]
    %v881 = vld [vmem:[%s5 + $0x24] sm:$0xf]
    %v882 = vld [vmem:[%s5 + $0x28] sm:$0xf]
    %v883 = vld [vmem:[%s5 + $0x2c] sm:$0xf]
    %v884 = vld [vmem:[%s5 + $0x30] sm:$0xf]
    %v885 = vld [vmem:[%s5 + $0x34] sm:$0xf]
    %v886 = vld [vmem:[%s5 + $0x38] sm:$0xf]
    %v887 = vld [vmem:[%s5 + $0x3c] sm:$0xf]
    %v888 = vld [vmem:[%s5 + $0x40] sm:$0xf]
    %v889 = vld [vmem:[%s5 + $0x44] sm:$0xf]
    %v890 = vld [vmem:[%s5 + $0x48] sm:$0xf]
    %v891 = vld [vmem:[%s5 + $0x4c] sm:$0xf]
    %v892 = vld [vmem:[%s5 + $0x50] sm:$0xf]
    %v893 = vld [vmem:[%s5 + $0x54] sm:$0xf]
    %v894 = vld [vmem:[%s5 + $0x58] sm:$0xf]
    %v895 = vld [vmem:[%s5 + $0x5c] sm:$0xf]
    %v896 = vld [vmem:[%s5 + $0x60] sm:$0xf]
    %v897 = vld [vmem:[%s5 + $0x64] sm:$0xf]
    %v898 = vld [vmem:[%s5 + $0x68] sm:$0xf]
    %v899 = vld [vmem:[%s5 + $0x6c] sm:$0xf]
    %v900 = vld [vmem:[%s5 + $0x70] sm:$0xf]
    %v901 = vld [vmem:[%s5 + $0x74] sm:$0xf]
    %v902 = vld [vmem:[%s5 + $0x78] sm:$0xf]
    %v903 = vld [vmem:[%s5 + $0x7c] sm:$0xf]
    %v904 = vld [vmem:[%s5 + $0x80] sm:$0xf]
    %v905 = vld [vmem:[%s5 + $0x84] sm:$0xf]
    %v906 = vld [vmem:[%s5 + $0x88] sm:$0xf]
    %v907 = vld [vmem:[%s5 + $0x8c] sm:$0xf]
    %v908 = vld [vmem:[%s5 + $0x90] sm:$0xf]
    %v909 = vld [vmem:[%s5 + $0x94] sm:$0x3]
    %v910 = vld [vmem:[%s6] sm:$0x1]
    %v912 = vlaneseq
    %v913 = vshrl.u32 %v912, 7
    %v914 = vsub.s32 0, %v913
    %v915 = vrot.slane %v910, %v914
    %v955 = vunpack.c.l.b16 %v872
    %v956 = vunpack.c.l.b16 %v873
    %v957 = vunpack.c.l.b16 %v874
    %v958 = vunpack.c.l.b16 %v875
    %v959 = vunpack.c.l.b16 %v876
    %v960 = vunpack.c.l.b16 %v877
    %v961 = vunpack.c.l.b16 %v878
    %v962 = vunpack.c.l.b16 %v879
    %v963 = vunpack.c.l.b16 %v880
    %v964 = vunpack.c.l.b16 %v881
    %v965 = vunpack.c.l.b16 %v882
    %v966 = vunpack.c.l.b16 %v883
    %v967 = vunpack.c.l.b16 %v884
    %v968 = vunpack.c.l.b16 %v885
    %v969 = vunpack.c.l.b16 %v886
    %v970 = vunpack.c.l.b16 %v887
    %v971 = vunpack.c.l.b16 %v888
    %v972 = vunpack.c.l.b16 %v889
    %v973 = vunpack.c.l.b16 %v890
    %v974 = vunpack.c.l.b16 %v891
    %v975 = vunpack.c.l.b16 %v892
    %v976 = vunpack.c.l.b16 %v893
    %v977 = vunpack.c.l.b16 %v894
    %v978 = vunpack.c.l.b16 %v895
    %v979 = vunpack.c.l.b16 %v896
    %v980 = vunpack.c.l.b16 %v897
    %v981 = vunpack.c.l.b16 %v898
    %v982 = vunpack.c.l.b16 %v899
    %v983 = vunpack.c.l.b16 %v900
    %v984 = vunpack.c.l.b16 %v901
    %v985 = vunpack.c.l.b16 %v902
    %v986 = vunpack.c.l.b16 %v903
    %v987 = vunpack.c.l.b16 %v904
    %v988 = vunpack.c.l.b16 %v905
    %v989 = vunpack.c.l.b16 %v906
    %v990 = vunpack.c.l.b16 %v907
    %v991 = vunpack.c.l.b16 %v908
    %v992 = vunpack.c.l.b16 %v909
    %v993 = vpack.c.b16 %v956, %v955
    %v994 = vpack.c.b16 %v958, %v957
    %v995 = vpack.c.b16 %v960, %v959
    %v996 = vpack.c.b16 %v962, %v961
    %v997 = vpack.c.b16 %v964, %v963
    %v998 = vpack.c.b16 %v966, %v965
    %v999 = vpack.c.b16 %v968, %v967
    %v1000 = vpack.c.b16 %v970, %v969
    %v1001 = vpack.c.b16 %v972, %v971
    %v1002 = vpack.c.b16 %v974, %v973
    %v1003 = vpack.c.b16 %v976, %v975
    %v1004 = vpack.c.b16 %v978, %v977
    %v1005 = vpack.c.b16 %v980, %v979
    %v1006 = vpack.c.b16 %v982, %v981
    %v1007 = vpack.c.b16 %v984, %v983
    %v1008 = vpack.c.b16 %v986, %v985
    %v1009 = vpack.c.b16 %v988, %v987
    %v1010 = vpack.c.b16 %v990, %v989
    %v1011 = vpack.c.b16 %v992, %v991
    %vm1030 = vcmask 359424
    %v1032 = vsel %vm1030, %v871, 0
    %vm1034 = vcmask 1045504
    %v1036 = vsel %vm1034, %v1011, 0
    %1038 = vmatprep.subr.bf16.mxu0 0
    %1039 = vmatpush1.bf16.msra.mxu0 %v993
    %1040 = vmatprep.subr.bf16.mxu0 0
    %1041 = vmatpush1.bf16.msra.mxu0 %v994
    %1042 = vmatprep.subr.bf16.mxu0 0
    %1043 = vmatpush1.bf16.msra.mxu0 %v995
    %1044 = vmatprep.subr.bf16.mxu0 0
    %1045 = vmatpush1.bf16.msra.mxu0 %v996
    %1046 = vmatprep.subr.bf16.mxu0 0
    %1047 = vmatpush1.bf16.msra.mxu0 %v997
    %1048 = vmatprep.subr.bf16.mxu0 0
    %1049 = vmatpush1.bf16.msra.mxu0 %v998
    %1050 = vmatprep.subr.bf16.mxu0 0
    %1051 = vmatpush1.bf16.msra.mxu0 %v999
    %1052 = vmatprep.subr.bf16.mxu0 0
    %1053 = vmatpush1.bf16.msra.mxu0 %v1000
    %1054 = vmatprep.subr.bf16.mxu0 0
    %1055 = vmatpush1.bf16.msra.mxu0 %v1001
    %1056 = vmatprep.subr.bf16.mxu0 0
    %1057 = vmatpush1.bf16.msra.mxu0 %v1002
    %1058 = vmatprep.subr.bf16.mxu0 0
    %1059 = vmatpush1.bf16.msra.mxu0 %v1003
    %1060 = vmatprep.subr.bf16.mxu0 0
    %1061 = vmatpush1.bf16.msra.mxu0 %v1004
    %1062 = vmatprep.subr.bf16.mxu0 0
    %1063 = vmatpush1.bf16.msra.mxu0 %v1005
    %1064 = vmatprep.subr.bf16.mxu0 0
    %1065 = vmatpush1.bf16.msra.mxu0 %v1006
    %1066 = vmatprep.subr.bf16.mxu0 0
    %1067 = vmatpush1.bf16.msra.mxu0 %v1007
    %1068 = vmatprep.subr.bf16.mxu0 0
    %1069 = vmatpush1.bf16.msra.mxu0 %v1008
    %1070 = vmatprep.mubr.bf16.mxu0 %v870
    %1071 = vmatmul.mubr.bf16.gmra.mrb[0].mxu0 %v869
    %v1072 = vpop.f32.mrb[0].mxu0
    %v1073 = vadd.f32 %v915, %v1072
    %v1074 = vpop.f32.mrb[0].mxu0
    %v1075 = vpop.f32.mrb[0].mxu0
    %v1076 = vpop.f32.mrb[0].mxu0
    %1077 = vdwg.mxu0
    %1078 = vmatprep.subr.bf16.mxu0 0
    %1079 = vmatpush1.bf16.msra.mxu0 %v1009
    %1080 = vmatprep.subr.bf16.mxu0 0
    %1081 = vmatpush1.bf16.msra.mxu0 %v1010
    %1082 = vmatprep.subr.bf16.mxu0 0
    %1083 = vmatpush1.bf16.msra.mxu0 %v1036
    %1084 = vmatprep.subr.bf16.mxu0 0
    %1085 = vmatpush1.bf16.msra.mxu0 0
    %1086 = vmatprep.subr.bf16.mxu0 0
    %1087 = vmatpush1.bf16.msra.mxu0 0
    %1088 = vmatprep.subr.bf16.mxu0 0
    %1089 = vmatpush1.bf16.msra.mxu0 0
    %1090 = vmatprep.subr.bf16.mxu0 0
    %1091 = vmatpush1.bf16.msra.mxu0 0
    %1092 = vmatprep.subr.bf16.mxu0 0
    %1093 = vmatpush1.bf16.msra.mxu0 0
    %1094 = vmatprep.subr.bf16.mxu0 0
    %1095 = vmatpush1.bf16.msra.mxu0 0
    %1096 = vmatprep.subr.bf16.mxu0 0
    %1097 = vmatpush1.bf16.msra.mxu0 0
    %1098 = vmatprep.subr.bf16.mxu0 0
    %1099 = vmatpush1.bf16.msra.mxu0 0
    %1100 = vmatprep.subr.bf16.mxu0 0
    %1101 = vmatpush1.bf16.msra.mxu0 0
    %1102 = vmatprep.subr.bf16.mxu0 0
    %1103 = vmatpush1.bf16.msra.mxu0 0
    %1104 = vmatprep.subr.bf16.mxu0 0
    %1105 = vmatpush1.bf16.msra.mxu0 0
    %1106 = vmatprep.subr.bf16.mxu0 0
    %1107 = vmatpush1.bf16.msra.mxu0 0
    %1108 = vmatprep.subr.bf16.mxu0 0
    %1109 = vmatpush1.bf16.msra.mxu0 0
    %1110 = vmatprep.mubr.bf16.mxu0 0
    %1111 = vmatmul.mubr.bf16.gmra.mrb[0].mxu0 %v1032
    %v1112 = vpop.f32.mrb[0].mxu0
    %v1113 = vadd.f32 %v1073, %v1112
    %v1114 = vpop.f32.mrb[0].mxu0
    %v1115 = vpop.f32.mrb[0].mxu0
    %v1116 = vpop.f32.mrb[0].mxu0
    %1117 = vdwg.mxu0
    %v1118 = vtanh.pop %v1113
    %v1119 = vmul.f32 %v1118, 2.0
    %vm1120 = vcmask 64512
    %1121 = vst.msk [vmem:[#allocation5] sm:$0xff] %vm1120, %v1119
    // Predicated region
    $region34: #{tpu_custom_call.1} parent=1 // pred_check
      _
    $region35: #{tpu_custom_call.1} parent=1 // pred_check_branch
      %1123 = sbr.rel (0) target = $region37
    $region36: #{tpu_custom_call.1} parent=1 // pred_region
      %s1125 = ssub.s32 128, 128
      %1126 = vsyncadd [#allocation4], %s1125
      %s1128 = sshll.u32 [#allocation5], 4
      %s1129 = int_to_ptr.vmem [resolvable:$true] %s1128
      %1131 = dma.vmem_to_hbm [thread:$0]  %s1129, 128, %s7, [#allocation4]
    $region37: #{tpu_custom_call.1} parent=1 // pred_fallthru
      _
    // Predicated region
    $region38: #{tpu_custom_call.1} parent=1 // pred_check
      _
    $region39: #{tpu_custom_call.1} parent=1 // pred_check_branch
      %1133 = sbr.rel (0) target = $region41
    $region40: #{tpu_custom_call.1} parent=1 // pred_region
      %1134 = dma.done [#allocation4], 128
    $region41: #{tpu_custom_call.1} parent=1 // pred_fallthru
      _
    %1135 = vsyncpa [#allocation3], 1
    %1136 = vsyncpa [#allocation4], 1

</llo_original>
